<compile_context>
chip_gen: v6e
topology: v6e:2x2x1
jax: 0.10.0
libtpu: 0.0.40
codegen_flags: <defaults>
</compile_context>

<pallas_src>
import jax
import jax.numpy as jnp
from jax.experimental import pallas as pl
from jax.experimental.pallas import tpu as pltpu

STATE_DIM = 206
HIDDEN = (512, 256, 256, 128, 64)


def _pdmc_kernel(
    x_ref,
    w1_ref, b1_ref,
    w2_ref, b2_ref,
    w3_ref, b3_ref,
    w4_ref, b4_ref,
    w5_ref, b5_ref,
    wh_ref, bh_ref,
    out_ref,
):
    def layer(h, w_ref, b_ref):
        # bf16 x bf16 matmul on the MXU with f32 accumulation; bias-add and
        # ReLU stay f32 on the VPU (v5e has no bf16 VPU/EUP).
        z = jnp.dot(h.astype(jnp.bfloat16), w_ref[...],
                    preferred_element_type=jnp.float32) + b_ref[...]
        return jnp.maximum(z, 0.0)

    h = x_ref[...]                      # (TB, 206) f32
    h = layer(h, w1_ref, b1_ref)        # (TB, 512)
    h = layer(h, w2_ref, b2_ref)        # (TB, 256)
    h = layer(h, w3_ref, b3_ref)        # (TB, 256)
    h = layer(h, w4_ref, b4_ref)        # (TB, 128)
    h = layer(h, w5_ref, b5_ref)        # (TB, 64)

    # Fused heads: one (64, 2) matmul. Lane 0 -> mean, lane 1 -> std.
    z = jnp.dot(h.astype(jnp.bfloat16), wh_ref[...],
                preferred_element_type=jnp.float32) + bh_ref[...]   # (TB, 2) f32
    col = jax.lax.broadcasted_iota(jnp.int32, z.shape, 1)
    mean = jax.nn.sigmoid(z)                      # EUP
    std = jnp.exp(jnp.clip(z, -2.0, 2.0))         # EUP
    out_ref[...] = jnp.where(col == 0, mean, std)


def _batch_tile(B):
    """Pick the batch tile (multiple of 8, <= 512).

    - Tiny batches: one tile (weight-DMA bound anyway).
    - Mid batches: split into >= 2 tiles so both v7x TensorCores get work and
      padding waste is minimized.
    - Large batches: 512-row tiles to amortize the ~0.35us/step grid overhead.
    """
    if B >= 1024:
        return 512
    if B <= 16:
        return max(8, -(-B // 8) * 8)
    half = -(-B // 2)               # ceil(B / 2)
    tb = -(-half // 8) * 8          # round up to the f32 sublane
    return min(512, tb)


@jax.jit
def pdmc_forward(x, kparams):
    """x: (B, STATE_DIM) f32, kparams from prepare_params.
    Returns (mean, std), each (B, 1) f32."""
    B = x.shape[0]
    TB = _batch_tile(B)
    n_tiles = -(-B // TB)
    B_pad = n_tiles * TB
    if B_pad != B:
        x = jnp.pad(x, ((0, B_pad - B), (0, 0)))

    (w1, b1), (w2, b2), (w3, b3), (w4, b4), (w5, b5), (wh, bh) = kparams
    args = (x, w1, b1, w2, b2, w3, b3, w4, b4, w5, b5, wh, bh)

    def resident(arr):
        # Full-array block; constant index_map keeps it VMEM-resident across
        # the grid (bf16 weights + f32 biases ~ 0.65 MiB total).
        return pl.BlockSpec(arr.shape, lambda i: (0, 0))

    in_specs = [pl.BlockSpec((TB, STATE_DIM), lambda i: (i, 0))]
    in_specs += [resident(a) for a in args[1:]]

    flops = 2 * B_pad * (STATE_DIM * 512 + 512 * 256 + 256 * 256
                         + 256 * 128 + 128 * 64 + 64 * 2)
    param_bytes = sum(int(a.size) * a.dtype.itemsize for a in args[1:])
    bytes_accessed = param_bytes + B_pad * (STATE_DIM + 2) * 4

    out = pl.pallas_call(
        _pdmc_kernel,
        grid=(n_tiles,),
        out_shape=jax.ShapeDtypeStruct((B_pad, 2), jnp.float32),
        in_specs=in_specs,
        out_specs=pl.BlockSpec((TB, 2), lambda i: (i, 0)),
        compiler_params=pltpu.CompilerParams(
            dimension_semantics=("parallel",)),
        cost_estimate=pl.CostEstimate(
            flops=flops,
            transcendentals=2 * B_pad,
            bytes_accessed=bytes_accessed),
    )(*args)

    mean = out[:B, 0:1]
    std = out[:B, 1:2]
    return mean, std


def init_params(key):
    """Deterministic init mirroring nn.Linear shapes (stored as (in, out), f32)."""
    dims = [(STATE_DIM, HIDDEN[0])]
    for i in range(len(HIDDEN) - 1):
        dims.append((HIDDEN[i], HIDDEN[i + 1]))
    dims.append((HIDDEN[-1], 1))  # mean head
    dims.append((HIDDEN[-1], 1))  # logstd head

    params = []
    for (fan_in, fan_out) in dims:
        key, kw, kb = jax.random.split(key, 3)
        bound = 1.0 / jnp.sqrt(fan_in)
        w = jax.random.uniform(kw, (fan_in, fan_out), jnp.float32, -bound, bound)
        b = jax.random.uniform(kb, (fan_out,), jnp.float32, -bound, bound)
        params.append((w, b))
    return tuple(params)


def prepare_params(params):
    """One-time layout/dtype fix-ups done OUTSIDE the jitted forward:
    weights -> bf16 (MXU-native), biases -> f32 (1, N) rows, the two 64->1
    heads fused into one (64, 2) matmul."""
    (w1, b1), (w2, b2), (w3, b3), (w4, b4), (w5, b5), (wm, bm), (ws, bs) = params
    layers = []
    for w, b in ((w1, b1), (w2, b2), (w3, b3), (w4, b4), (w5, b5)):
        layers.append((w.astype(jnp.bfloat16), b.reshape(1, -1).astype(jnp.float32)))
    wh = jnp.concatenate([wm, ws], axis=1).astype(jnp.bfloat16)      # (64, 2)
    bh = jnp.concatenate([bm, bs]).reshape(1, 2).astype(jnp.float32)  # (1, 2)
    layers.append((wh, bh))
    return tuple(layers)


def reference_forward(x, params):
    """Pure-JAX f32 reference matching the PyTorch forward."""
    (w1, b1), (w2, b2), (w3, b3), (w4, b4), (w5, b5), (wm, bm), (ws, bs) = params
    h = x
    for w, b in ((w1, b1), (w2, b2), (w3, b3), (w4, b4), (w5, b5)):
        h = jnp.maximum(h @ w + b, 0.0)
    mean = jax.nn.sigmoid(h @ wm + bm)
    std = jnp.exp(jnp.clip(h @ ws + bs, -2.0, 2.0))
    return mean, std


if __name__ == "__main__":
    key = jax.random.PRNGKey(0)
    key_p, key_x = jax.random.split(key)

    params = init_params(key_p)
    kparams = prepare_params(params)

    B = 8
    x = jax.random.normal(key_x, (B, STATE_DIM), jnp.float32)

    mean, std = pdmc_forward(x, kparams)
    jax.block_until_ready((mean, std))

    mean_ref, std_ref = reference_forward(x, params)
    assert mean.shape == (B, 1) and std.shape == (B, 1)
    # bf16 matmul path: compare to the f32 reference with a relaxed tolerance.
    assert jnp.allclose(mean, mean_ref, atol=2e-2, rtol=2e-2)
    assert jnp.allclose(std, std_ref, atol=2e-2, rtol=2e-2)
    assert bool(jnp.all(std > 0.0))

    print("KERNEL_OK")
</pallas_src>

<mosaic_0001>
module attributes {stable_mosaic.version = 11 : i64} {
  func.func @_pdmc_kernel(%arg0: i32, %arg1: memref<8x206xf32, #tpu.memory_space<vmem>>, %arg2: memref<206x512xbf16, #tpu.memory_space<vmem>>, %arg3: memref<1x512xf32, #tpu.memory_space<vmem>>, %arg4: memref<512x256xbf16, #tpu.memory_space<vmem>>, %arg5: memref<1x256xf32, #tpu.memory_space<vmem>>, %arg6: memref<256x256xbf16, #tpu.memory_space<vmem>>, %arg7: memref<1x256xf32, #tpu.memory_space<vmem>>, %arg8: memref<256x128xbf16, #tpu.memory_space<vmem>>, %arg9: memref<1x128xf32, #tpu.memory_space<vmem>>, %arg10: memref<128x64xbf16, #tpu.memory_space<vmem>>, %arg11: memref<1x64xf32, #tpu.memory_space<vmem>>, %arg12: memref<64x2xbf16, #tpu.memory_space<vmem>>, %arg13: memref<1x2xf32, #tpu.memory_space<vmem>>, %arg14: memref<8x2xf32, #tpu.memory_space<vmem>>) attributes {dimension_semantics = [#tpu.dimension_semantics<parallel>], iteration_bounds = array<i64: 1>, scalar_prefetch = 0 : i64, scratch_operands = 0 : i64, tpu.core_type = #tpu.core_type<tc>, window_params = [{transform_indices = @transform_0, window_bounds = array<i64: 8, 206>}, {pipeline_mode = #tpu.pipeline_mode<synchronous>, transform_indices = @transform_1, window_bounds = array<i64: 206, 512>}, {pipeline_mode = #tpu.pipeline_mode<synchronous>, transform_indices = @transform_2, window_bounds = array<i64: 1, 512>}, {pipeline_mode = #tpu.pipeline_mode<synchronous>, transform_indices = @transform_3, window_bounds = array<i64: 512, 256>}, {pipeline_mode = #tpu.pipeline_mode<synchronous>, transform_indices = @transform_4, window_bounds = array<i64: 1, 256>}, {pipeline_mode = #tpu.pipeline_mode<synchronous>, transform_indices = @transform_5, window_bounds = array<i64: 256, 256>}, {pipeline_mode = #tpu.pipeline_mode<synchronous>, transform_indices = @transform_6, window_bounds = array<i64: 1, 256>}, {pipeline_mode = #tpu.pipeline_mode<synchronous>, transform_indices = @transform_7, window_bounds = array<i64: 256, 128>}, {pipeline_mode = #tpu.pipeline_mode<synchronous>, transform_indices = @transform_8, window_bounds = array<i64: 1, 128>}, {pipeline_mode = #tpu.pipeline_mode<synchronous>, transform_indices = @transform_9, window_bounds = array<i64: 128, 64>}, {pipeline_mode = #tpu.pipeline_mode<synchronous>, transform_indices = @transform_10, window_bounds = array<i64: 1, 64>}, {pipeline_mode = #tpu.pipeline_mode<synchronous>, transform_indices = @transform_11, window_bounds = array<i64: 64, 2>}, {pipeline_mode = #tpu.pipeline_mode<synchronous>, transform_indices = @transform_12, window_bounds = array<i64: 1, 2>}, {transform_indices = @transform_13, window_bounds = array<i64: 8, 2>}]} {
    %c0 = arith.constant 0 : index
    %c0_0 = arith.constant 0 : index
    %0 = vector.load %arg1[%c0, %c0_0] : memref<8x206xf32, #tpu.memory_space<vmem>>, vector<8x206xf32>
    %1 = arith.truncf %0 : vector<8x206xf32> to vector<8x206xbf16>
    %c0_1 = arith.constant 0 : index
    %c0_2 = arith.constant 0 : index
    %2 = vector.load %arg2[%c0_1, %c0_2] : memref<206x512xbf16, #tpu.memory_space<vmem>>, vector<206x512xbf16>
    %cst = arith.constant dense<0.000000e+00> : vector<8x512xf32>
    %3 = tpu.matmul %1, %2, %cst {dimension_numbers = #tpu.dot_dimension_numbers<[1], [0], [0], [1], [0, 0, 1, 1], [], []>} : vector<8x206xbf16>, vector<206x512xbf16>, vector<8x512xf32> -> vector<8x512xf32>
    %c0_3 = arith.constant 0 : index
    %c0_4 = arith.constant 0 : index
    %4 = vector.load %arg3[%c0_3, %c0_4] : memref<1x512xf32, #tpu.memory_space<vmem>>, vector<1x512xf32>
    %5 = vector.broadcast %4 : vector<1x512xf32> to vector<8x512xf32>
    %6 = arith.addf %3, %5 : vector<8x512xf32>
    %cst_5 = arith.constant 0.000000e+00 : f32
    %7 = vector.broadcast %cst_5 : f32 to vector<8x512xf32>
    %8 = arith.maximumf %6, %7 : vector<8x512xf32>
    %9 = arith.truncf %8 : vector<8x512xf32> to vector<8x512xbf16>
    %c0_6 = arith.constant 0 : index
    %c0_7 = arith.constant 0 : index
    %10 = vector.load %arg4[%c0_6, %c0_7] : memref<512x256xbf16, #tpu.memory_space<vmem>>, vector<512x256xbf16>
    %cst_8 = arith.constant dense<0.000000e+00> : vector<8x256xf32>
    %11 = tpu.matmul %9, %10, %cst_8 {dimension_numbers = #tpu.dot_dimension_numbers<[1], [0], [0], [1], [0, 0, 1, 1], [], []>} : vector<8x512xbf16>, vector<512x256xbf16>, vector<8x256xf32> -> vector<8x256xf32>
    %c0_9 = arith.constant 0 : index
    %c0_10 = arith.constant 0 : index
    %12 = vector.load %arg5[%c0_9, %c0_10] : memref<1x256xf32, #tpu.memory_space<vmem>>, vector<1x256xf32>
    %13 = vector.broadcast %12 : vector<1x256xf32> to vector<8x256xf32>
    %14 = arith.addf %11, %13 : vector<8x256xf32>
    %cst_11 = arith.constant 0.000000e+00 : f32
    %15 = vector.broadcast %cst_11 : f32 to vector<8x256xf32>
    %16 = arith.maximumf %14, %15 : vector<8x256xf32>
    %17 = arith.truncf %16 : vector<8x256xf32> to vector<8x256xbf16>
    %c0_12 = arith.constant 0 : index
    %c0_13 = arith.constant 0 : index
    %18 = vector.load %arg6[%c0_12, %c0_13] : memref<256x256xbf16, #tpu.memory_space<vmem>>, vector<256x256xbf16>
    %cst_14 = arith.constant dense<0.000000e+00> : vector<8x256xf32>
    %19 = tpu.matmul %17, %18, %cst_14 {dimension_numbers = #tpu.dot_dimension_numbers<[1], [0], [0], [1], [0, 0, 1, 1], [], []>} : vector<8x256xbf16>, vector<256x256xbf16>, vector<8x256xf32> -> vector<8x256xf32>
    %c0_15 = arith.constant 0 : index
    %c0_16 = arith.constant 0 : index
    %20 = vector.load %arg7[%c0_15, %c0_16] : memref<1x256xf32, #tpu.memory_space<vmem>>, vector<1x256xf32>
    %21 = vector.broadcast %20 : vector<1x256xf32> to vector<8x256xf32>
    %22 = arith.addf %19, %21 : vector<8x256xf32>
    %cst_17 = arith.constant 0.000000e+00 : f32
    %23 = vector.broadcast %cst_17 : f32 to vector<8x256xf32>
    %24 = arith.maximumf %22, %23 : vector<8x256xf32>
    %25 = arith.truncf %24 : vector<8x256xf32> to vector<8x256xbf16>
    %c0_18 = arith.constant 0 : index
    %c0_19 = arith.constant 0 : index
    %26 = vector.load %arg8[%c0_18, %c0_19] : memref<256x128xbf16, #tpu.memory_space<vmem>>, vector<256x128xbf16>
    %cst_20 = arith.constant dense<0.000000e+00> : vector<8x128xf32>
    %27 = tpu.matmul %25, %26, %cst_20 {dimension_numbers = #tpu.dot_dimension_numbers<[1], [0], [0], [1], [0, 0, 1, 1], [], []>} : vector<8x256xbf16>, vector<256x128xbf16>, vector<8x128xf32> -> vector<8x128xf32>
    %c0_21 = arith.constant 0 : index
    %c0_22 = arith.constant 0 : index
    %28 = vector.load %arg9[%c0_21, %c0_22] : memref<1x128xf32, #tpu.memory_space<vmem>>, vector<1x128xf32>
    %29 = vector.broadcast %28 : vector<1x128xf32> to vector<8x128xf32>
    %30 = arith.addf %27, %29 : vector<8x128xf32>
    %cst_23 = arith.constant 0.000000e+00 : f32
    %31 = vector.broadcast %cst_23 : f32 to vector<8x128xf32>
    %32 = arith.maximumf %30, %31 : vector<8x128xf32>
    %33 = arith.truncf %32 : vector<8x128xf32> to vector<8x128xbf16>
    %c0_24 = arith.constant 0 : index
    %c0_25 = arith.constant 0 : index
    %34 = vector.load %arg10[%c0_24, %c0_25] : memref<128x64xbf16, #tpu.memory_space<vmem>>, vector<128x64xbf16>
    %cst_26 = arith.constant dense<0.000000e+00> : vector<8x64xf32>
    %35 = tpu.matmul %33, %34, %cst_26 {dimension_numbers = #tpu.dot_dimension_numbers<[1], [0], [0], [1], [0, 0, 1, 1], [], []>} : vector<8x128xbf16>, vector<128x64xbf16>, vector<8x64xf32> -> vector<8x64xf32>
    %c0_27 = arith.constant 0 : index
    %c0_28 = arith.constant 0 : index
    %36 = vector.load %arg11[%c0_27, %c0_28] : memref<1x64xf32, #tpu.memory_space<vmem>>, vector<1x64xf32>
    %37 = vector.broadcast %36 : vector<1x64xf32> to vector<8x64xf32>
    %38 = arith.addf %35, %37 : vector<8x64xf32>
    %cst_29 = arith.constant 0.000000e+00 : f32
    %39 = vector.broadcast %cst_29 : f32 to vector<8x64xf32>
    %40 = arith.maximumf %38, %39 : vector<8x64xf32>
    %41 = arith.truncf %40 : vector<8x64xf32> to vector<8x64xbf16>
    %c0_30 = arith.constant 0 : index
    %c0_31 = arith.constant 0 : index
    %42 = vector.load %arg12[%c0_30, %c0_31] : memref<64x2xbf16, #tpu.memory_space<vmem>>, vector<64x2xbf16>
    %cst_32 = arith.constant dense<0.000000e+00> : vector<8x2xf32>
    %43 = tpu.matmul %41, %42, %cst_32 {dimension_numbers = #tpu.dot_dimension_numbers<[1], [0], [0], [1], [0, 0, 1, 1], [], []>} : vector<8x64xbf16>, vector<64x2xbf16>, vector<8x2xf32> -> vector<8x2xf32>
    %c0_33 = arith.constant 0 : index
    %c0_34 = arith.constant 0 : index
    %44 = vector.load %arg13[%c0_33, %c0_34] : memref<1x2xf32, #tpu.memory_space<vmem>>, vector<1x2xf32>
    %45 = vector.broadcast %44 : vector<1x2xf32> to vector<8x2xf32>
    %46 = arith.addf %43, %45 : vector<8x2xf32>
    %47 = tpu.iota {dimensions = array<i32: 1>} : vector<8x2xi32>
    %48 = arith.negf %46 : vector<8x2xf32>
    %49 = math.exp %48 : vector<8x2xf32>
    %cst_35 = arith.constant 1.000000e+00 : f32
    %50 = vector.broadcast %cst_35 : f32 to vector<8x2xf32>
    %51 = arith.addf %50, %49 : vector<8x2xf32>
    %52 = arith.divf %50, %51 : vector<8x2xf32>
    %cst_36 = arith.constant -2.000000e+00 : f32
    %cst_37 = arith.constant 2.000000e+00 : f32
    %53 = vector.broadcast %cst_36 : f32 to vector<8x2xf32>
    %54 = arith.maximumf %53, %46 : vector<8x2xf32>
    %55 = vector.broadcast %cst_37 : f32 to vector<8x2xf32>
    %56 = arith.minimumf %55, %54 : vector<8x2xf32>
    %57 = math.exp %56 : vector<8x2xf32>
    %c0_i32 = arith.constant 0 : i32
    %58 = vector.broadcast %c0_i32 : i32 to vector<8x2xi32>
    %59 = arith.cmpi eq, %47, %58 : vector<8x2xi32>
    %60 = arith.select %59, %52, %57 : vector<8x2xi1>, vector<8x2xf32>
    %c0_38 = arith.constant 0 : index
    %c0_39 = arith.constant 0 : index
    %61 = vector.load %arg14[%c0_38, %c0_39] : memref<8x2xf32, #tpu.memory_space<vmem>>, vector<8x2xf32>
    tpu.vector_store %arg14[%c0_38, %c0_39], %60 {strides = array<i32>} : memref<8x2xf32, #tpu.memory_space<vmem>>, vector<8x2xf32>,
    return
  }
  func.func @transform_0(%arg0: i32) -> (i32, i32) {
    %c0_i32 = arith.constant 0 : i32
    %c0_i32_0 = arith.constant 0 : i32
    return %arg0, %c0_i32 : i32, i32
  }
  func.func @transform_1(%arg0: i32) -> (i32, i32) {
    %c0_i32 = arith.constant 0 : i32
    %c0_i32_0 = arith.constant 0 : i32
    %c0_i32_1 = arith.constant 0 : i32
    return %c0_i32, %c0_i32_0 : i32, i32
  }
  func.func @transform_2(%arg0: i32) -> (i32, i32) {
    %c0_i32 = arith.constant 0 : i32
    %c0_i32_0 = arith.constant 0 : i32
    %c0_i32_1 = arith.constant 0 : i32
    return %c0_i32, %c0_i32_0 : i32, i32
  }
  func.func @transform_3(%arg0: i32) -> (i32, i32) {
    %c0_i32 = arith.constant 0 : i32
    %c0_i32_0 = arith.constant 0 : i32
    %c0_i32_1 = arith.constant 0 : i32
    return %c0_i32, %c0_i32_0 : i32, i32
  }
  func.func @transform_4(%arg0: i32) -> (i32, i32) {
    %c0_i32 = arith.constant 0 : i32
    %c0_i32_0 = arith.constant 0 : i32
    %c0_i32_1 = arith.constant 0 : i32
    return %c0_i32, %c0_i32_0 : i32, i32
  }
  func.func @transform_5(%arg0: i32) -> (i32, i32) {
    %c0_i32 = arith.constant 0 : i32
    %c0_i32_0 = arith.constant 0 : i32
    %c0_i32_1 = arith.constant 0 : i32
    return %c0_i32, %c0_i32_0 : i32, i32
  }
  func.func @transform_6(%arg0: i32) -> (i32, i32) {
    %c0_i32 = arith.constant 0 : i32
    %c0_i32_0 = arith.constant 0 : i32
    %c0_i32_1 = arith.constant 0 : i32
    return %c0_i32, %c0_i32_0 : i32, i32
  }
  func.func @transform_7(%arg0: i32) -> (i32, i32) {
    %c0_i32 = arith.constant 0 : i32
    %c0_i32_0 = arith.constant 0 : i32
    %c0_i32_1 = arith.constant 0 : i32
    return %c0_i32, %c0_i32_0 : i32, i32
  }
  func.func @transform_8(%arg0: i32) -> (i32, i32) {
    %c0_i32 = arith.constant 0 : i32
    %c0_i32_0 = arith.constant 0 : i32
    %c0_i32_1 = arith.constant 0 : i32
    return %c0_i32, %c0_i32_0 : i32, i32
  }
  func.func @transform_9(%arg0: i32) -> (i32, i32) {
    %c0_i32 = arith.constant 0 : i32
    %c0_i32_0 = arith.constant 0 : i32
    %c0_i32_1 = arith.constant 0 : i32
    return %c0_i32, %c0_i32_0 : i32, i32
  }
  func.func @transform_10(%arg0: i32) -> (i32, i32) {
    %c0_i32 = arith.constant 0 : i32
    %c0_i32_0 = arith.constant 0 : i32
    %c0_i32_1 = arith.constant 0 : i32
    return %c0_i32, %c0_i32_0 : i32, i32
  }
  func.func @transform_11(%arg0: i32) -> (i32, i32) {
    %c0_i32 = arith.constant 0 : i32
    %c0_i32_0 = arith.constant 0 : i32
    %c0_i32_1 = arith.constant 0 : i32
    return %c0_i32, %c0_i32_0 : i32, i32
  }
  func.func @transform_12(%arg0: i32) -> (i32, i32) {
    %c0_i32 = arith.constant 0 : i32
    %c0_i32_0 = arith.constant 0 : i32
    %c0_i32_1 = arith.constant 0 : i32
    return %c0_i32, %c0_i32_0 : i32, i32
  }
  func.func @transform_13(%arg0: i32) -> (i32, i32) {
    %c0_i32 = arith.constant 0 : i32
    %c0_i32_0 = arith.constant 0 : i32
    return %arg0, %c0_i32 : i32, i32
  }
}

</mosaic_0001>

<llo_original>
// kernel: pdmc_forward.1
$region0: #{pdmc_forward.1}
  #allocation0 [shape = 'u32[]', space=smem, size = 0x4, offset = 0x4, fixed_abs, tag = 'smem constant byte address 0x4 - core index']
  #allocation1 [shape = 'u32[144,128]{1,0:T(1,128)}', space=vmem, size = 0x12000, scoped, tag = 'internal scratch']
  %s0 = inlined_call_operand.hbm [shape: f32[8,206], index: 0, kind: input, shape index: {}]
  %s1 = inlined_call_operand.hbm [shape: bf16[206,512], index: 1, kind: input, shape index: {}]
  %s2 = inlined_call_operand.vmem [shape: f32[1,512], index: 2, kind: input, shape index: {}]
  %s3 = inlined_call_operand.hbm [shape: bf16[512,256], index: 3, kind: input, shape index: {}]
  %s4 = inlined_call_operand.vmem [shape: f32[1,256], index: 4, kind: input, shape index: {}]
  %s5 = inlined_call_operand.hbm [shape: bf16[256,256], index: 5, kind: input, shape index: {}]
  %s6 = inlined_call_operand.vmem [shape: f32[1,256], index: 6, kind: input, shape index: {}]
  %s7 = inlined_call_operand.vmem [shape: bf16[256,128], index: 7, kind: input, shape index: {}]
  %s8 = inlined_call_operand.vmem [shape: f32[1,128], index: 8, kind: input, shape index: {}]
  %s9 = inlined_call_operand.vmem [shape: bf16[128,64], index: 9, kind: input, shape index: {}]
  %s10 = inlined_call_operand.vmem [shape: f32[1,64], index: 10, kind: input, shape index: {}]
  %s11 = inlined_call_operand.vmem [shape: bf16[64,2], index: 11, kind: input, shape index: {}]
  %s12 = inlined_call_operand.vmem [shape: f32[1,2], index: 12, kind: input, shape index: {}]
  %s13 = inlined_call_operand.vmem [shape: f32[8,2], index: 13, kind: output, shape index: {}]
  %s14 = sld [smem:[#allocation0]]
  $region78: #{pdmc_forward.1} parent=0
    _
  %s16 = ssub.s32 1, %s14
  %s17 = scalar_select 0, %s16, %s14
  $region1: #{pdmc_forward.1} parent=0
    #allocation2 [shape = 'u8[8192]{0}', space=vmem, size = 0x2000, scoped, tag = 'input window, operand 0, single buffered']
    #allocation3 [shape = 's32[1]{0}', space=sflag, size = 0x4, scoped, tag = 'scoped memory for pdmc_forward.1']
    #allocation4 [shape = 'u8[212992]{0}', space=vmem, size = 0x34000, scoped, tag = 'input window, operand 1, single buffered']
    #allocation5 [shape = 's32[1]{0}', space=sflag, size = 0x4, scoped, tag = 'scoped memory for pdmc_forward.1']
    #allocation6 [shape = 'u8[262144]{0}', space=vmem, size = 0x40000, scoped, tag = 'input window, operand 3, single buffered']
    #allocation7 [shape = 'u8[131072]{0}', space=vmem, size = 0x20000, scoped, tag = 'input window, operand 5, single buffered']
    #allocation8 [shape = 's32[1]{0}', space=sflag, size = 0x4, scoped, tag = 'scoped memory for pdmc_forward.1']
    %18 = vsyncpa [#allocation3], 0
    %19 = vsyncpa [#allocation5], 0
    %20 = vsyncpa [#allocation8], 0
    // Predicated region
    $region2: #{pdmc_forward.1} parent=1 // pred_check
      _
    $region3: #{pdmc_forward.1} parent=1 // pred_check_branch
      %22 = sbr.rel (0) target = $region5
    $region4: #{pdmc_forward.1} parent=1 // pred_region
      %s24 = ssub.s32 256, 256
      %25 = vsyncadd [#allocation3], %s24
      %s27 = sshll.u32 [#allocation2], 4
      %s28 = int_to_ptr.vmem [resolvable:$true] %s27
      %30 = dma.hbm_to_vmem [thread:$0]  %s0, 256, %s28, [#allocation3]
    $region5: #{pdmc_forward.1} parent=1 // pred_fallthru
      _
    // Predicated region
    $region6: #{pdmc_forward.1} parent=1 // pred_check
      _
    $region7: #{pdmc_forward.1} parent=1 // pred_check_branch
      %32 = sbr.rel (0) target = $region9
    $region8: #{pdmc_forward.1} parent=1 // pred_region
      %s34 = ssub.s32 6656, 6656
      %35 = vsyncadd [#allocation5], %s34
      %s36 = sshll.u32 [#allocation4], 4
      %s37 = int_to_ptr.vmem [resolvable:$true] %s36
      %42 = dma.hbm_to_vmem [thread:$0]  %s1, 6656, %s37, [#allocation5], 256, 256, 16
    $region9: #{pdmc_forward.1} parent=1 // pred_fallthru
      _
    // Predicated region
    $region10: #{pdmc_forward.1} parent=1 // pred_check
      _
    $region11: #{pdmc_forward.1} parent=1 // pred_check_branch
      %44 = sbr.rel (0) target = $region13
    $region12: #{pdmc_forward.1} parent=1 // pred_region
      _
    $region13: #{pdmc_forward.1} parent=1 // pred_fallthru
      _
    // Predicated region
    $region14: #{pdmc_forward.1} parent=1 // pred_check
      _
    $region15: #{pdmc_forward.1} parent=1 // pred_check_branch
      %46 = sbr.rel (0) target = $region17
    $region16: #{pdmc_forward.1} parent=1 // pred_region
      %s48 = ssub.s32 8192, 8192
      %49 = vsyncadd [#allocation5], %s48
      %s50 = sshll.u32 [#allocation6], 4
      %s51 = int_to_ptr.vmem [resolvable:$true] %s50
      %56 = dma.hbm_to_vmem [thread:$0]  %s3, 8192, %s51, [#allocation5], 128, 128, 8
    $region17: #{pdmc_forward.1} parent=1 // pred_fallthru
      _
    // Predicated region
    $region18: #{pdmc_forward.1} parent=1 // pred_check
      _
    $region19: #{pdmc_forward.1} parent=1 // pred_check_branch
      %58 = sbr.rel (0) target = $region21
    $region20: #{pdmc_forward.1} parent=1 // pred_region
      _
    $region21: #{pdmc_forward.1} parent=1 // pred_fallthru
      _
    // Predicated region
    $region22: #{pdmc_forward.1} parent=1 // pred_check
      _
    $region23: #{pdmc_forward.1} parent=1 // pred_check_branch
      %60 = sbr.rel (0) target = $region25
    $region24: #{pdmc_forward.1} parent=1 // pred_region
      %s62 = ssub.s32 4096, 4096
      %63 = vsyncadd [#allocation8], %s62
      %s64 = sshll.u32 [#allocation7], 4
      %s65 = int_to_ptr.vmem [resolvable:$true] %s64
      %70 = dma.hbm_to_vmem [thread:$0]  %s5, 4096, %s65, [#allocation8], 128, 128, 8
    $region25: #{pdmc_forward.1} parent=1 // pred_fallthru
      _
    // Predicated region
    $region26: #{pdmc_forward.1} parent=1 // pred_check
      _
    $region27: #{pdmc_forward.1} parent=1 // pred_check_branch
      %72 = sbr.rel (0) target = $region29
    $region28: #{pdmc_forward.1} parent=1 // pred_region
      _
    $region29: #{pdmc_forward.1} parent=1 // pred_fallthru
      _
    // Predicated region
    $region30: #{pdmc_forward.1} parent=1 // pred_check
      _
    $region31: #{pdmc_forward.1} parent=1 // pred_check_branch
      %74 = sbr.rel (0) target = $region33
    $region32: #{pdmc_forward.1} parent=1 // pred_region
      _
    $region33: #{pdmc_forward.1} parent=1 // pred_fallthru
      _
    // Predicated region
    $region34: #{pdmc_forward.1} parent=1 // pred_check
      _
    $region35: #{pdmc_forward.1} parent=1 // pred_check_branch
      %76 = sbr.rel (0) target = $region37
    $region36: #{pdmc_forward.1} parent=1 // pred_region
      _
    $region37: #{pdmc_forward.1} parent=1 // pred_fallthru
      _
    // Predicated region
    $region38: #{pdmc_forward.1} parent=1 // pred_check
      _
    $region39: #{pdmc_forward.1} parent=1 // pred_check_branch
      %78 = sbr.rel (0) target = $region41
    $region40: #{pdmc_forward.1} parent=1 // pred_region
      _
    $region41: #{pdmc_forward.1} parent=1 // pred_fallthru
      _
    // Predicated region
    $region42: #{pdmc_forward.1} parent=1 // pred_check
      _
    $region43: #{pdmc_forward.1} parent=1 // pred_check_branch
      %80 = sbr.rel (0) target = $region45
    $region44: #{pdmc_forward.1} parent=1 // pred_region
      _
    $region45: #{pdmc_forward.1} parent=1 // pred_fallthru
      _
    // Predicated region
    $region46: #{pdmc_forward.1} parent=1 // pred_check
      _
    $region47: #{pdmc_forward.1} parent=1 // pred_check_branch
      %82 = sbr.rel (0) target = $region49
    $region48: #{pdmc_forward.1} parent=1 // pred_region
      _
    $region49: #{pdmc_forward.1} parent=1 // pred_fallthru
      _
    // Predicated region
    $region50: #{pdmc_forward.1} parent=1 // pred_check
      _
    $region51: #{pdmc_forward.1} parent=1 // pred_check_branch
      %84 = sbr.rel (0) target = $region53
    $region52: #{pdmc_forward.1} parent=1 // pred_region
      _
    $region53: #{pdmc_forward.1} parent=1 // pred_fallthru
      _
    // Predicated region
    $region54: #{pdmc_forward.1} parent=1 // pred_check
      _
    $region55: #{pdmc_forward.1} parent=1 // pred_check_branch
      %86 = sbr.rel (0) target = $region57
    $region56: #{pdmc_forward.1} parent=1 // pred_region
      %87 = dma.done [#allocation3], 256
    $region57: #{pdmc_forward.1} parent=1 // pred_fallthru
      _
    // Predicated region
    $region58: #{pdmc_forward.1} parent=1 // pred_check
      _
    $region59: #{pdmc_forward.1} parent=1 // pred_check_branch
      %89 = sbr.rel (0) target = $region61
    $region60: #{pdmc_forward.1} parent=1 // pred_region
      %90 = dma.done [#allocation5], 6656
    $region61: #{pdmc_forward.1} parent=1 // pred_fallthru
      _
    // Predicated region
    $region62: #{pdmc_forward.1} parent=1 // pred_check
      _
    $region63: #{pdmc_forward.1} parent=1 // pred_check_branch
      %92 = sbr.rel (0) target = $region65
    $region64: #{pdmc_forward.1} parent=1 // pred_region
      %93 = dma.done [#allocation5], 8192
    $region65: #{pdmc_forward.1} parent=1 // pred_fallthru
      _
    // Predicated region
    $region66: #{pdmc_forward.1} parent=1 // pred_check
      _
    $region67: #{pdmc_forward.1} parent=1 // pred_check_branch
      %95 = sbr.rel (0) target = $region69
    $region68: #{pdmc_forward.1} parent=1 // pred_region
      %96 = dma.done [#allocation8], 4096
    $region69: #{pdmc_forward.1} parent=1 // pred_fallthru
      _
    %v98 = vld [vmem:[#allocation2] sm:$0xff]
    %v99 = vld [vmem:[#allocation2 + $0x8] sm:$0xff]
    %v100 = vpack.c.bf16 %v98, %v98
    %v101 = vpack.c.bf16 %v99, %v99
    %v102 = vld [vmem:[#allocation4] sm:$0xff]
    %v103 = vld [vmem:[#allocation4 + $0x8] sm:$0xff]
    %v104 = vld [vmem:[#allocation4 + $0x10] sm:$0xff]
    %v105 = vld [vmem:[#allocation4 + $0x18] sm:$0xff]
    %v106 = vld [vmem:[#allocation4 + $0x20] sm:$0xff]
    %v107 = vld [vmem:[#allocation4 + $0x28] sm:$0xff]
    %v108 = vld [vmem:[#allocation4 + $0x30] sm:$0xff]
    %v109 = vld [vmem:[#allocation4 + $0x38] sm:$0xff]
    %v110 = vld [vmem:[#allocation4 + $0x40] sm:$0xff]
    %v111 = vld [vmem:[#allocation4 + $0x48] sm:$0xff]
    %v112 = vld [vmem:[#allocation4 + $0x50] sm:$0xff]
    %v113 = vld [vmem:[#allocation4 + $0x58] sm:$0xff]
    %v114 = vld [vmem:[#allocation4 + $0x60] sm:$0xff]
    %v115 = vld [vmem:[#allocation4 + $0x68] sm:$0xff]
    %v116 = vld [vmem:[#allocation4 + $0x70] sm:$0xff]
    %v117 = vld [vmem:[#allocation4 + $0x78] sm:$0xff]
    %v118 = vld [vmem:[#allocation4 + $0x80] sm:$0xff]
    %v119 = vld [vmem:[#allocation4 + $0x88] sm:$0xff]
    %v120 = vld [vmem:[#allocation4 + $0x90] sm:$0xff]
    %v121 = vld [vmem:[#allocation4 + $0x98] sm:$0xff]
    %v122 = vld [vmem:[#allocation4 + $0xa0] sm:$0xff]
    %v123 = vld [vmem:[#allocation4 + $0xa8] sm:$0xff]
    %v124 = vld [vmem:[#allocation4 + $0xb0] sm:$0xff]
    %v125 = vld [vmem:[#allocation4 + $0xb8] sm:$0xff]
    %v126 = vld [vmem:[#allocation4 + $0xc0] sm:$0xff]
    %v127 = vld [vmem:[#allocation4 + $0xc8] sm:$0xff]
    %v128 = vld [vmem:[#allocation4 + $0xd0] sm:$0xff]
    %v129 = vld [vmem:[#allocation4 + $0xd8] sm:$0xff]
    %v130 = vld [vmem:[#allocation4 + $0xe0] sm:$0xff]
    %v131 = vld [vmem:[#allocation4 + $0xe8] sm:$0xff]
    %v132 = vld [vmem:[#allocation4 + $0xf0] sm:$0xff]
    %v133 = vld [vmem:[#allocation4 + $0xf8] sm:$0xff]
    %v134 = vld [vmem:[#allocation4 + $0x100] sm:$0xff]
    %v135 = vld [vmem:[#allocation4 + $0x108] sm:$0xff]
    %v136 = vld [vmem:[#allocation4 + $0x110] sm:$0xff]
    %v137 = vld [vmem:[#allocation4 + $0x118] sm:$0xff]
    %v138 = vld [vmem:[#allocation4 + $0x120] sm:$0xff]
    %v139 = vld [vmem:[#allocation4 + $0x128] sm:$0xff]
    %v140 = vld [vmem:[#allocation4 + $0x130] sm:$0xff]
    %v141 = vld [vmem:[#allocation4 + $0x138] sm:$0xff]
    %v142 = vld [vmem:[#allocation4 + $0x140] sm:$0xff]
    %v143 = vld [vmem:[#allocation4 + $0x148] sm:$0xff]
    %v144 = vld [vmem:[#allocation4 + $0x150] sm:$0xff]
    %v145 = vld [vmem:[#allocation4 + $0x158] sm:$0xff]
    %v146 = vld [vmem:[#allocation4 + $0x160] sm:$0xff]
    %v147 = vld [vmem:[#allocation4 + $0x168] sm:$0xff]
    %v148 = vld [vmem:[#allocation4 + $0x170] sm:$0xff]
    %v149 = vld [vmem:[#allocation4 + $0x178] sm:$0xff]
    %v150 = vld [vmem:[#allocation4 + $0x180] sm:$0xff]
    %v151 = vld [vmem:[#allocation4 + $0x188] sm:$0xff]
    %v152 = vld [vmem:[#allocation4 + $0x190] sm:$0x77]
    %v153 = vld [vmem:[#allocation4 + $0x198] sm:$0x77]
    %v154 = vld [vmem:[%s2] sm:$0xf]
    %v156 = vlaneseq
    %v157 = vshrl.u32 %v156, 7
    %v158 = vsub.s32 0, %v157
    %v159 = vrot.slane %v154, %v158
    %v160 = vlaneseq
    %v161 = vshrl.u32 %v160, 7
    %v162 = vsub.s32 1, %v161
    %v163 = vrot.slane %v154, %v162
    %v164 = vlaneseq
    %v165 = vshrl.u32 %v164, 7
    %v166 = vsub.s32 2, %v165
    %v167 = vrot.slane %v154, %v166
    %v168 = vlaneseq
    %v169 = vshrl.u32 %v168, 7
    %v170 = vsub.s32 3, %v169
    %v171 = vrot.slane %v154, %v170
    %v228 = vunpack.c.l.b16 %v102
    %v229 = vunpack.c.h.b16 %v102
    %v230 = vunpack.c.l.b16 %v103
    %v231 = vunpack.c.h.b16 %v103
    %v232 = vunpack.c.l.b16 %v104
    %v233 = vunpack.c.h.b16 %v104
    %v234 = vunpack.c.l.b16 %v105
    %v235 = vunpack.c.h.b16 %v105
    %v236 = vunpack.c.l.b16 %v106
    %v237 = vunpack.c.h.b16 %v106
    %v238 = vunpack.c.l.b16 %v107
    %v239 = vunpack.c.h.b16 %v107
    %v240 = vunpack.c.l.b16 %v108
    %v241 = vunpack.c.h.b16 %v108
    %v242 = vunpack.c.l.b16 %v109
    %v243 = vunpack.c.h.b16 %v109
    %v244 = vunpack.c.l.b16 %v110
    %v245 = vunpack.c.h.b16 %v110
    %v246 = vunpack.c.l.b16 %v111
    %v247 = vunpack.c.h.b16 %v111
    %v248 = vunpack.c.l.b16 %v112
    %v249 = vunpack.c.h.b16 %v112
    %v250 = vunpack.c.l.b16 %v113
    %v251 = vunpack.c.h.b16 %v113
    %v252 = vunpack.c.l.b16 %v114
    %v253 = vunpack.c.h.b16 %v114
    %v254 = vunpack.c.l.b16 %v115
    %v255 = vunpack.c.h.b16 %v115
    %v256 = vunpack.c.l.b16 %v116
    %v257 = vunpack.c.h.b16 %v116
    %v258 = vunpack.c.l.b16 %v117
    %v259 = vunpack.c.h.b16 %v117
    %v260 = vunpack.c.l.b16 %v118
    %v261 = vunpack.c.h.b16 %v118
    %v262 = vunpack.c.l.b16 %v119
    %v263 = vunpack.c.h.b16 %v119
    %v264 = vunpack.c.l.b16 %v120
    %v265 = vunpack.c.h.b16 %v120
    %v266 = vunpack.c.l.b16 %v121
    %v267 = vunpack.c.h.b16 %v121
    %v268 = vunpack.c.l.b16 %v122
    %v269 = vunpack.c.h.b16 %v122
    %v270 = vunpack.c.l.b16 %v123
    %v271 = vunpack.c.h.b16 %v123
    %v272 = vunpack.c.l.b16 %v124
    %v273 = vunpack.c.h.b16 %v124
    %v274 = vunpack.c.l.b16 %v125
    %v275 = vunpack.c.h.b16 %v125
    %v276 = vunpack.c.l.b16 %v126
    %v277 = vunpack.c.h.b16 %v126
    %v278 = vunpack.c.l.b16 %v127
    %v279 = vunpack.c.h.b16 %v127
    %v280 = vunpack.c.l.b16 %v128
    %v281 = vunpack.c.h.b16 %v128
    %v282 = vunpack.c.l.b16 %v129
    %v283 = vunpack.c.h.b16 %v129
    %v284 = vunpack.c.l.b16 %v130
    %v285 = vunpack.c.h.b16 %v130
    %v286 = vunpack.c.l.b16 %v131
    %v287 = vunpack.c.h.b16 %v131
    %v288 = vunpack.c.l.b16 %v132
    %v289 = vunpack.c.h.b16 %v132
    %v290 = vunpack.c.l.b16 %v133
    %v291 = vunpack.c.h.b16 %v133
    %v292 = vunpack.c.l.b16 %v134
    %v293 = vunpack.c.h.b16 %v134
    %v294 = vunpack.c.l.b16 %v135
    %v295 = vunpack.c.h.b16 %v135
    %v296 = vunpack.c.l.b16 %v136
    %v297 = vunpack.c.h.b16 %v136
    %v298 = vunpack.c.l.b16 %v137
    %v299 = vunpack.c.h.b16 %v137
    %v300 = vunpack.c.l.b16 %v138
    %v301 = vunpack.c.h.b16 %v138
    %v302 = vunpack.c.l.b16 %v139
    %v303 = vunpack.c.h.b16 %v139
    %v304 = vunpack.c.l.b16 %v140
    %v305 = vunpack.c.h.b16 %v140
    %v306 = vunpack.c.l.b16 %v141
    %v307 = vunpack.c.h.b16 %v141
    %v308 = vunpack.c.l.b16 %v142
    %v309 = vunpack.c.h.b16 %v142
    %v310 = vunpack.c.l.b16 %v143
    %v311 = vunpack.c.h.b16 %v143
    %v312 = vunpack.c.l.b16 %v144
    %v313 = vunpack.c.h.b16 %v144
    %v314 = vunpack.c.l.b16 %v145
    %v315 = vunpack.c.h.b16 %v145
    %v316 = vunpack.c.l.b16 %v146
    %v317 = vunpack.c.h.b16 %v146
    %v318 = vunpack.c.l.b16 %v147
    %v319 = vunpack.c.h.b16 %v147
    %v320 = vunpack.c.l.b16 %v148
    %v321 = vunpack.c.h.b16 %v148
    %v322 = vunpack.c.l.b16 %v149
    %v323 = vunpack.c.h.b16 %v149
    %v324 = vunpack.c.l.b16 %v150
    %v325 = vunpack.c.h.b16 %v150
    %v326 = vunpack.c.l.b16 %v151
    %v327 = vunpack.c.h.b16 %v151
    %v328 = vunpack.c.l.b16 %v152
    %v329 = vunpack.c.h.b16 %v152
    %v330 = vunpack.c.l.b16 %v153
    %v331 = vunpack.c.h.b16 %v153
    %v332 = vpack.c.b16 %v232, %v228
    %v333 = vpack.c.b16 %v233, %v229
    %v334 = vpack.c.b16 %v234, %v230
    %v335 = vpack.c.b16 %v235, %v231
    %v336 = vpack.c.b16 %v240, %v236
    %v337 = vpack.c.b16 %v241, %v237
    %v338 = vpack.c.b16 %v242, %v238
    %v339 = vpack.c.b16 %v243, %v239
    %v340 = vpack.c.b16 %v248, %v244
    %v341 = vpack.c.b16 %v249, %v245
    %v342 = vpack.c.b16 %v250, %v246
    %v343 = vpack.c.b16 %v251, %v247
    %v344 = vpack.c.b16 %v256, %v252
    %v345 = vpack.c.b16 %v257, %v253
    %v346 = vpack.c.b16 %v258, %v254
    %v347 = vpack.c.b16 %v259, %v255
    %v348 = vpack.c.b16 %v264, %v260
    %v349 = vpack.c.b16 %v265, %v261
    %v350 = vpack.c.b16 %v266, %v262
    %v351 = vpack.c.b16 %v267, %v263
    %v352 = vpack.c.b16 %v272, %v268
    %v353 = vpack.c.b16 %v273, %v269
    %v354 = vpack.c.b16 %v274, %v270
    %v355 = vpack.c.b16 %v275, %v271
    %v356 = vpack.c.b16 %v280, %v276
    %v357 = vpack.c.b16 %v281, %v277
    %v358 = vpack.c.b16 %v282, %v278
    %v359 = vpack.c.b16 %v283, %v279
    %v360 = vpack.c.b16 %v288, %v284
    %v361 = vpack.c.b16 %v289, %v285
    %v362 = vpack.c.b16 %v290, %v286
    %v363 = vpack.c.b16 %v291, %v287
    %v364 = vpack.c.b16 %v296, %v292
    %v365 = vpack.c.b16 %v297, %v293
    %v366 = vpack.c.b16 %v298, %v294
    %v367 = vpack.c.b16 %v299, %v295
    %v368 = vpack.c.b16 %v304, %v300
    %v369 = vpack.c.b16 %v305, %v301
    %v370 = vpack.c.b16 %v306, %v302
    %v371 = vpack.c.b16 %v307, %v303
    %v372 = vpack.c.b16 %v312, %v308
    %v373 = vpack.c.b16 %v313, %v309
    %v374 = vpack.c.b16 %v314, %v310
    %v375 = vpack.c.b16 %v315, %v311
    %v376 = vpack.c.b16 %v320, %v316
    %v377 = vpack.c.b16 %v321, %v317
    %v378 = vpack.c.b16 %v322, %v318
    %v379 = vpack.c.b16 %v323, %v319
    %v380 = vpack.c.b16 %v328, %v324
    %v381 = vpack.c.b16 %v329, %v325
    %v382 = vpack.c.b16 %v330, %v326
    %v383 = vpack.c.b16 %v331, %v327
    %vm432 = vcmask 637952
    %v434 = vsel %vm432, %v101, 0
    %vm436 = vcmask 1046528
    %v438 = vsel %vm436, %v380, 0
    %v441 = vsel %vm436, %v381, 0
    %v444 = vsel %vm436, %v382, 0
    %v447 = vsel %vm436, %v383, 0
    %449 = vmatprep.subr.bf16.mxu0 %v361
    %450 = vmatpush1.bf16.msra.mxu0 %v360
    %451 = vmatprep.subr.bf16.mxu0 %v357
    %452 = vmatpush1.bf16.msra.mxu0 %v356
    %453 = vmatprep.subr.bf16.mxu0 %v353
    %454 = vmatpush1.bf16.msra.mxu0 %v352
    %455 = vmatprep.subr.bf16.mxu0 %v349
    %456 = vmatpush1.bf16.msra.mxu0 %v348
    %457 = vmatprep.subr.bf16.mxu0 %v345
    %458 = vmatpush1.bf16.msra.mxu0 %v344
    %459 = vmatprep.subr.bf16.mxu0 %v341
    %460 = vmatpush1.bf16.msra.mxu0 %v340
    %461 = vmatprep.subr.bf16.mxu0 %v337
    %462 = vmatpush1.bf16.msra.mxu0 %v336
    %463 = vmatprep.subr.bf16.mxu0 %v333
    %464 = vmatpush1.bf16.msra.mxu0 %v332
    %465 = vmatprep.subr.bf16.mxu0 0
    %466 = vmatpush2.bf16.msra.mxu0 0
    %467 = vmatprep.subr.bf16.mxu0 0
    %468 = vmatpush2.bf16.msra.mxu0 0
    %469 = vmatprep.subr.bf16.mxu0 0
    %470 = vmatpush2.bf16.msra.mxu0 0
    %471 = vmatprep.subr.bf16.mxu0 %v441
    %472 = vmatpush2.bf16.msra.mxu0 %v438
    %473 = vmatprep.subr.bf16.mxu0 %v377
    %474 = vmatpush2.bf16.msra.mxu0 %v376
    %475 = vmatprep.subr.bf16.mxu0 %v373
    %476 = vmatpush2.bf16.msra.mxu0 %v372
    %477 = vmatprep.subr.bf16.mxu0 %v369
    %478 = vmatpush2.bf16.msra.mxu0 %v368
    %479 = vmatprep.subr.bf16.mxu0 %v365
    %480 = vmatpush2.bf16.msra.mxu0 %v364
    %481 = vmatprep.mubr.bf16.mxu0 %v434
    %482 = vmatmul.mubr.bf16.gmra.mxu0 %v100
    %v483 = vpop.f32.mrf.mxu0
    %v484 = vadd.f32 %v159, %v483
    %v485 = vpop.f32.mrf.mxu0
    %v486 = vadd.f32 %v163, %v485
    %v487 = vpop.f32.mrf.mxu0
    %v488 = vpop.f32.mrf.mxu0
    %489 = vdwg.mxu0
    %490 = vmatprep.subr.bf16.mxu0 %v363
    %491 = vmatpush1.bf16.msra.mxu0 %v362
    %492 = vmatprep.subr.bf16.mxu0 %v359
    %493 = vmatpush1.bf16.msra.mxu0 %v358
    %494 = vmatprep.subr.bf16.mxu0 %v355
    %495 = vmatpush1.bf16.msra.mxu0 %v354
    %496 = vmatprep.subr.bf16.mxu0 %v351
    %497 = vmatpush1.bf16.msra.mxu0 %v350
    %498 = vmatprep.subr.bf16.mxu0 %v347
    %499 = vmatpush1.bf16.msra.mxu0 %v346
    %500 = vmatprep.subr.bf16.mxu0 %v343
    %501 = vmatpush1.bf16.msra.mxu0 %v342
    %502 = vmatprep.subr.bf16.mxu0 %v339
    %503 = vmatpush1.bf16.msra.mxu0 %v338
    %504 = vmatprep.subr.bf16.mxu0 %v335
    %505 = vmatpush1.bf16.msra.mxu0 %v334
    %506 = vmatprep.subr.bf16.mxu0 0
    %507 = vmatpush2.bf16.msra.mxu0 0
    %508 = vmatprep.subr.bf16.mxu0 0
    %509 = vmatpush2.bf16.msra.mxu0 0
    %510 = vmatprep.subr.bf16.mxu0 0
    %511 = vmatpush2.bf16.msra.mxu0 0
    %512 = vmatprep.subr.bf16.mxu0 %v447
    %513 = vmatpush2.bf16.msra.mxu0 %v444
    %514 = vmatprep.subr.bf16.mxu0 %v379
    %515 = vmatpush2.bf16.msra.mxu0 %v378
    %516 = vmatprep.subr.bf16.mxu0 %v375
    %517 = vmatpush2.bf16.msra.mxu0 %v374
    %518 = vmatprep.subr.bf16.mxu0 %v371
    %519 = vmatpush2.bf16.msra.mxu0 %v370
    %520 = vmatprep.subr.bf16.mxu0 %v367
    %521 = vmatpush2.bf16.msra.mxu0 %v366
    %522 = vmatprep.mubr.bf16.mxu0 %v434
    %523 = vmatmul.mubr.bf16.gmra.mxu0 %v100
    %v524 = vpop.f32.mrf.mxu0
    %v525 = vadd.f32 %v167, %v524
    %v526 = vpop.f32.mrf.mxu0
    %v527 = vadd.f32 %v171, %v526
    %v528 = vpop.f32.mrf.mxu0
    %v529 = vpop.f32.mrf.mxu0
    %530 = vdwg.mxu0
    %v531 = vmax.f32 %v484, 0.0
    %v532 = vmax.f32 %v486, 0.0
    %v533 = vmax.f32 %v525, 0.0
    %v534 = vmax.f32 %v527, 0.0
    %v535 = vpack.c.bf16 %v531, %v531
    %v536 = vpack.c.bf16 %v532, %v532
    %v537 = vpack.c.bf16 %v533, %v533
    %v538 = vpack.c.bf16 %v534, %v534
    %v539 = vld [vmem:[#allocation6] sm:$0xff]
    %v540 = vld [vmem:[#allocation6 + $0x8] sm:$0xff]
    %v541 = vld [vmem:[#allocation6 + $0x10] sm:$0xff]
    %v542 = vld [vmem:[#allocation6 + $0x18] sm:$0xff]
    %v543 = vld [vmem:[#allocation6 + $0x20] sm:$0xff]
    %v544 = vld [vmem:[#allocation6 + $0x28] sm:$0xff]
    %v545 = vld [vmem:[#allocation6 + $0x30] sm:$0xff]
    %v546 = vld [vmem:[#allocation6 + $0x38] sm:$0xff]
    %v547 = vld [vmem:[#allocation6 + $0x40] sm:$0xff]
    %v548 = vld [vmem:[#allocation6 + $0x48] sm:$0xff]
    %v549 = vld [vmem:[#allocation6 + $0x50] sm:$0xff]
    %v550 = vld [vmem:[#allocation6 + $0x58] sm:$0xff]
    %v551 = vld [vmem:[#allocation6 + $0x60] sm:$0xff]
    %v552 = vld [vmem:[#allocation6 + $0x68] sm:$0xff]
    %v553 = vld [vmem:[#allocation6 + $0x70] sm:$0xff]
    %v554 = vld [vmem:[#allocation6 + $0x78] sm:$0xff]
    %v555 = vld [vmem:[#allocation6 + $0x80] sm:$0xff]
    %v556 = vld [vmem:[#allocation6 + $0x88] sm:$0xff]
    %v557 = vld [vmem:[#allocation6 + $0x90] sm:$0xff]
    %v558 = vld [vmem:[#allocation6 + $0x98] sm:$0xff]
    %v559 = vld [vmem:[#allocation6 + $0xa0] sm:$0xff]
    %v560 = vld [vmem:[#allocation6 + $0xa8] sm:$0xff]
    %v561 = vld [vmem:[#allocation6 + $0xb0] sm:$0xff]
    %v562 = vld [vmem:[#allocation6 + $0xb8] sm:$0xff]
    %v563 = vld [vmem:[#allocation6 + $0xc0] sm:$0xff]
    %v564 = vld [vmem:[#allocation6 + $0xc8] sm:$0xff]
    %v565 = vld [vmem:[#allocation6 + $0xd0] sm:$0xff]
    %v566 = vld [vmem:[#allocation6 + $0xd8] sm:$0xff]
    %v567 = vld [vmem:[#allocation6 + $0xe0] sm:$0xff]
    %v568 = vld [vmem:[#allocation6 + $0xe8] sm:$0xff]
    %v569 = vld [vmem:[#allocation6 + $0xf0] sm:$0xff]
    %v570 = vld [vmem:[#allocation6 + $0xf8] sm:$0xff]
    %v571 = vld [vmem:[#allocation6 + $0x100] sm:$0xff]
    %v572 = vld [vmem:[#allocation6 + $0x108] sm:$0xff]
    %v573 = vld [vmem:[#allocation6 + $0x110] sm:$0xff]
    %v574 = vld [vmem:[#allocation6 + $0x118] sm:$0xff]
    %v575 = vld [vmem:[#allocation6 + $0x120] sm:$0xff]
    %v576 = vld [vmem:[#allocation6 + $0x128] sm:$0xff]
    %v577 = vld [vmem:[#allocation6 + $0x130] sm:$0xff]
    %v578 = vld [vmem:[#allocation6 + $0x138] sm:$0xff]
    %v579 = vld [vmem:[#allocation6 + $0x140] sm:$0xff]
    %v580 = vld [vmem:[#allocation6 + $0x148] sm:$0xff]
    %v581 = vld [vmem:[#allocation6 + $0x150] sm:$0xff]
    %v582 = vld [vmem:[#allocation6 + $0x158] sm:$0xff]
    %v583 = vld [vmem:[#allocation6 + $0x160] sm:$0xff]
    %v584 = vld [vmem:[#allocation6 + $0x168] sm:$0xff]
    %v585 = vld [vmem:[#allocation6 + $0x170] sm:$0xff]
    %v586 = vld [vmem:[#allocation6 + $0x178] sm:$0xff]
    %v587 = vld [vmem:[#allocation6 + $0x180] sm:$0xff]
    %v588 = vld [vmem:[#allocation6 + $0x188] sm:$0xff]
    %v589 = vld [vmem:[#allocation6 + $0x190] sm:$0xff]
    %v590 = vld [vmem:[#allocation6 + $0x198] sm:$0xff]
    %v591 = vld [vmem:[#allocation6 + $0x1a0] sm:$0xff]
    %v592 = vld [vmem:[#allocation6 + $0x1a8] sm:$0xff]
    %v593 = vld [vmem:[#allocation6 + $0x1b0] sm:$0xff]
    %v594 = vld [vmem:[#allocation6 + $0x1b8] sm:$0xff]
    %v595 = vld [vmem:[#allocation6 + $0x1c0] sm:$0xff]
    %v596 = vld [vmem:[#allocation6 + $0x1c8] sm:$0xff]
    %v597 = vld [vmem:[#allocation6 + $0x1d0] sm:$0xff]
    %v598 = vld [vmem:[#allocation6 + $0x1d8] sm:$0xff]
    %v599 = vld [vmem:[#allocation6 + $0x1e0] sm:$0xff]
    %v600 = vld [vmem:[#allocation6 + $0x1e8] sm:$0xff]
    %v601 = vld [vmem:[#allocation6 + $0x1f0] sm:$0xff]
    %v602 = vld [vmem:[#allocation6 + $0x1f8] sm:$0xff]
    %v603 = vld [vmem:[%s4] sm:$0x3]
    %v605 = vlaneseq
    %v606 = vshrl.u32 %v605, 7
    %v607 = vsub.s32 0, %v606
    %v608 = vrot.slane %v603, %v607
    %v609 = vlaneseq
    %v610 = vshrl.u32 %v609, 7
    %v611 = vsub.s32 1, %v610
    %v612 = vrot.slane %v603, %v611
    %v679 = vunpack.c.l.b16 %v539
    %v680 = vunpack.c.h.b16 %v539
    %v681 = vunpack.c.l.b16 %v540
    %v682 = vunpack.c.h.b16 %v540
    %v683 = vunpack.c.l.b16 %v541
    %v684 = vunpack.c.h.b16 %v541
    %v685 = vunpack.c.l.b16 %v542
    %v686 = vunpack.c.h.b16 %v542
    %v687 = vunpack.c.l.b16 %v543
    %v688 = vunpack.c.h.b16 %v543
    %v689 = vunpack.c.l.b16 %v544
    %v690 = vunpack.c.h.b16 %v544
    %v691 = vunpack.c.l.b16 %v545
    %v692 = vunpack.c.h.b16 %v545
    %v693 = vunpack.c.l.b16 %v546
    %v694 = vunpack.c.h.b16 %v546
    %v695 = vunpack.c.l.b16 %v547
    %v696 = vunpack.c.h.b16 %v547
    %v697 = vunpack.c.l.b16 %v548
    %v698 = vunpack.c.h.b16 %v548
    %v699 = vunpack.c.l.b16 %v549
    %v700 = vunpack.c.h.b16 %v549
    %v701 = vunpack.c.l.b16 %v550
    %v702 = vunpack.c.h.b16 %v550
    %v703 = vunpack.c.l.b16 %v551
    %v704 = vunpack.c.h.b16 %v551
    %v705 = vunpack.c.l.b16 %v552
    %v706 = vunpack.c.h.b16 %v552
    %v707 = vunpack.c.l.b16 %v553
    %v708 = vunpack.c.h.b16 %v553
    %v709 = vunpack.c.l.b16 %v554
    %v710 = vunpack.c.h.b16 %v554
    %v711 = vunpack.c.l.b16 %v555
    %v712 = vunpack.c.h.b16 %v555
    %v713 = vunpack.c.l.b16 %v556
    %v714 = vunpack.c.h.b16 %v556
    %v715 = vunpack.c.l.b16 %v557
    %v716 = vunpack.c.h.b16 %v557
    %v717 = vunpack.c.l.b16 %v558
    %v718 = vunpack.c.h.b16 %v558
    %v719 = vunpack.c.l.b16 %v559
    %v720 = vunpack.c.h.b16 %v559
    %v721 = vunpack.c.l.b16 %v560
    %v722 = vunpack.c.h.b16 %v560
    %v723 = vunpack.c.l.b16 %v561
    %v724 = vunpack.c.h.b16 %v561
    %v725 = vunpack.c.l.b16 %v562
    %v726 = vunpack.c.h.b16 %v562
    %v727 = vunpack.c.l.b16 %v563
    %v728 = vunpack.c.h.b16 %v563
    %v729 = vunpack.c.l.b16 %v564
    %v730 = vunpack.c.h.b16 %v564
    %v731 = vunpack.c.l.b16 %v565
    %v732 = vunpack.c.h.b16 %v565
    %v733 = vunpack.c.l.b16 %v566
    %v734 = vunpack.c.h.b16 %v566
    %v735 = vunpack.c.l.b16 %v567
    %v736 = vunpack.c.h.b16 %v567
    %v737 = vunpack.c.l.b16 %v568
    %v738 = vunpack.c.h.b16 %v568
    %v739 = vunpack.c.l.b16 %v569
    %v740 = vunpack.c.h.b16 %v569
    %v741 = vunpack.c.l.b16 %v570
    %v742 = vunpack.c.h.b16 %v570
    %v743 = vunpack.c.l.b16 %v571
    %v744 = vunpack.c.h.b16 %v571
    %v745 = vunpack.c.l.b16 %v572
    %v746 = vunpack.c.h.b16 %v572
    %v747 = vunpack.c.l.b16 %v573
    %v748 = vunpack.c.h.b16 %v573
    %v749 = vunpack.c.l.b16 %v574
    %v750 = vunpack.c.h.b16 %v574
    %v751 = vunpack.c.l.b16 %v575
    %v752 = vunpack.c.h.b16 %v575
    %v753 = vunpack.c.l.b16 %v576
    %v754 = vunpack.c.h.b16 %v576
    %v755 = vunpack.c.l.b16 %v577
    %v756 = vunpack.c.h.b16 %v577
    %v757 = vunpack.c.l.b16 %v578
    %v758 = vunpack.c.h.b16 %v578
    %v759 = vunpack.c.l.b16 %v579
    %v760 = vunpack.c.h.b16 %v579
    %v761 = vunpack.c.l.b16 %v580
    %v762 = vunpack.c.h.b16 %v580
    %v763 = vunpack.c.l.b16 %v581
    %v764 = vunpack.c.h.b16 %v581
    %v765 = vunpack.c.l.b16 %v582
    %v766 = vunpack.c.h.b16 %v582
    %v767 = vunpack.c.l.b16 %v583
    %v768 = vunpack.c.h.b16 %v583
    %v769 = vunpack.c.l.b16 %v584
    %v770 = vunpack.c.h.b16 %v584
    %v771 = vunpack.c.l.b16 %v585
    %v772 = vunpack.c.h.b16 %v585
    %v773 = vunpack.c.l.b16 %v586
    %v774 = vunpack.c.h.b16 %v586
    %v775 = vunpack.c.l.b16 %v587
    %v776 = vunpack.c.h.b16 %v587
    %v777 = vunpack.c.l.b16 %v588
    %v778 = vunpack.c.h.b16 %v588
    %v779 = vunpack.c.l.b16 %v589
    %v780 = vunpack.c.h.b16 %v589
    %v781 = vunpack.c.l.b16 %v590
    %v782 = vunpack.c.h.b16 %v590
    %v783 = vunpack.c.l.b16 %v591
    %v784 = vunpack.c.h.b16 %v591
    %v785 = vunpack.c.l.b16 %v592
    %v786 = vunpack.c.h.b16 %v592
    %v787 = vunpack.c.l.b16 %v593
    %v788 = vunpack.c.h.b16 %v593
    %v789 = vunpack.c.l.b16 %v594
    %v790 = vunpack.c.h.b16 %v594
    %v791 = vunpack.c.l.b16 %v595
    %v792 = vunpack.c.h.b16 %v595
    %v793 = vunpack.c.l.b16 %v596
    %v794 = vunpack.c.h.b16 %v596
    %v795 = vunpack.c.l.b16 %v597
    %v796 = vunpack.c.h.b16 %v597
    %v797 = vunpack.c.l.b16 %v598
    %v798 = vunpack.c.h.b16 %v598
    %v799 = vunpack.c.l.b16 %v599
    %v800 = vunpack.c.h.b16 %v599
    %v801 = vunpack.c.l.b16 %v600
    %v802 = vunpack.c.h.b16 %v600
    %v803 = vunpack.c.l.b16 %v601
    %v804 = vunpack.c.h.b16 %v601
    %v805 = vunpack.c.l.b16 %v602
    %v806 = vunpack.c.h.b16 %v602
    %v807 = vpack.c.b16 %v681, %v679
    %v808 = vpack.c.b16 %v682, %v680
    %v809 = vpack.c.b16 %v685, %v683
    %v810 = vpack.c.b16 %v686, %v684
    %v811 = vpack.c.b16 %v689, %v687
    %v812 = vpack.c.b16 %v690, %v688
    %v813 = vpack.c.b16 %v693, %v691
    %v814 = vpack.c.b16 %v694, %v692
    %v815 = vpack.c.b16 %v697, %v695
    %v816 = vpack.c.b16 %v698, %v696
    %v817 = vpack.c.b16 %v701, %v699
    %v818 = vpack.c.b16 %v702, %v700
    %v819 = vpack.c.b16 %v705, %v703
    %v820 = vpack.c.b16 %v706, %v704
    %v821 = vpack.c.b16 %v709, %v707
    %v822 = vpack.c.b16 %v710, %v708
    %v823 = vpack.c.b16 %v713, %v711
    %v824 = vpack.c.b16 %v714, %v712
    %v825 = vpack.c.b16 %v717, %v715
    %v826 = vpack.c.b16 %v718, %v716
    %v827 = vpack.c.b16 %v721, %v719
    %v828 = vpack.c.b16 %v722, %v720
    %v829 = vpack.c.b16 %v725, %v723
    %v830 = vpack.c.b16 %v726, %v724
    %v831 = vpack.c.b16 %v729, %v727
    %v832 = vpack.c.b16 %v730, %v728
    %v833 = vpack.c.b16 %v733, %v731
    %v834 = vpack.c.b16 %v734, %v732
    %v835 = vpack.c.b16 %v737, %v735
    %v836 = vpack.c.b16 %v738, %v736
    %v837 = vpack.c.b16 %v741, %v739
    %v838 = vpack.c.b16 %v742, %v740
    %v839 = vpack.c.b16 %v745, %v743
    %v840 = vpack.c.b16 %v746, %v744
    %v841 = vpack.c.b16 %v749, %v747
    %v842 = vpack.c.b16 %v750, %v748
    %v843 = vpack.c.b16 %v753, %v751
    %v844 = vpack.c.b16 %v754, %v752
    %v845 = vpack.c.b16 %v757, %v755
    %v846 = vpack.c.b16 %v758, %v756
    %v847 = vpack.c.b16 %v761, %v759
    %v848 = vpack.c.b16 %v762, %v760
    %v849 = vpack.c.b16 %v765, %v763
    %v850 = vpack.c.b16 %v766, %v764
    %v851 = vpack.c.b16 %v769, %v767
    %v852 = vpack.c.b16 %v770, %v768
    %v853 = vpack.c.b16 %v773, %v771
    %v854 = vpack.c.b16 %v774, %v772
    %v855 = vpack.c.b16 %v777, %v775
    %v856 = vpack.c.b16 %v778, %v776
    %v857 = vpack.c.b16 %v781, %v779
    %v858 = vpack.c.b16 %v782, %v780
    %v859 = vpack.c.b16 %v785, %v783
    %v860 = vpack.c.b16 %v786, %v784
    %v861 = vpack.c.b16 %v789, %v787
    %v862 = vpack.c.b16 %v790, %v788
    %v863 = vpack.c.b16 %v793, %v791
    %v864 = vpack.c.b16 %v794, %v792
    %v865 = vpack.c.b16 %v797, %v795
    %v866 = vpack.c.b16 %v798, %v796
    %v867 = vpack.c.b16 %v801, %v799
    %v868 = vpack.c.b16 %v802, %v800
    %v869 = vpack.c.b16 %v805, %v803
    %v870 = vpack.c.b16 %v806, %v804
    %935 = vmatprep.subr.bf16.mxu0 %v822
    %936 = vmatpush1.bf16.msra.mxu0 %v821
    %937 = vmatprep.subr.bf16.mxu0 %v820
    %938 = vmatpush1.bf16.msra.mxu0 %v819
    %939 = vmatprep.subr.bf16.mxu0 %v818
    %940 = vmatpush1.bf16.msra.mxu0 %v817
    %941 = vmatprep.subr.bf16.mxu0 %v816
    %942 = vmatpush1.bf16.msra.mxu0 %v815
    %943 = vmatprep.subr.bf16.mxu0 %v814
    %944 = vmatpush1.bf16.msra.mxu0 %v813
    %945 = vmatprep.subr.bf16.mxu0 %v812
    %946 = vmatpush1.bf16.msra.mxu0 %v811
    %947 = vmatprep.subr.bf16.mxu0 %v810
    %948 = vmatpush1.bf16.msra.mxu0 %v809
    %949 = vmatprep.subr.bf16.mxu0 %v808
    %950 = vmatpush1.bf16.msra.mxu0 %v807
    %951 = vmatprep.subr.bf16.mxu0 %v838
    %952 = vmatpush2.bf16.msra.mxu0 %v837
    %953 = vmatprep.subr.bf16.mxu0 %v836
    %954 = vmatpush2.bf16.msra.mxu0 %v835
    %955 = vmatprep.subr.bf16.mxu0 %v834
    %956 = vmatpush2.bf16.msra.mxu0 %v833
    %957 = vmatprep.subr.bf16.mxu0 %v832
    %958 = vmatpush2.bf16.msra.mxu0 %v831
    %959 = vmatprep.subr.bf16.mxu0 %v830
    %960 = vmatpush2.bf16.msra.mxu0 %v829
    %961 = vmatprep.subr.bf16.mxu0 %v828
    %962 = vmatpush2.bf16.msra.mxu0 %v827
    %963 = vmatprep.subr.bf16.mxu0 %v826
    %964 = vmatpush2.bf16.msra.mxu0 %v825
    %965 = vmatprep.subr.bf16.mxu0 %v824
    %966 = vmatpush2.bf16.msra.mxu0 %v823
    %967 = vmatprep.mubr.bf16.mxu0 %v536
    %968 = vmatmul.mubr.bf16.gmra.mxu0 %v535
    %v969 = vpop.f32.mrf.mxu0
    %v970 = vadd.f32 %v608, %v969
    %v971 = vpop.f32.mrf.mxu0
    %v972 = vadd.f32 %v612, %v971
    %v973 = vpop.f32.mrf.mxu0
    %v974 = vpop.f32.mrf.mxu0
    %975 = vdwg.mxu0
    %976 = vmatprep.subr.bf16.mxu0 %v854
    %977 = vmatpush1.bf16.msra.mxu0 %v853
    %978 = vmatprep.subr.bf16.mxu0 %v852
    %979 = vmatpush1.bf16.msra.mxu0 %v851
    %980 = vmatprep.subr.bf16.mxu0 %v850
    %981 = vmatpush1.bf16.msra.mxu0 %v849
    %982 = vmatprep.subr.bf16.mxu0 %v848
    %983 = vmatpush1.bf16.msra.mxu0 %v847
    %984 = vmatprep.subr.bf16.mxu0 %v846
    %985 = vmatpush1.bf16.msra.mxu0 %v845
    %986 = vmatprep.subr.bf16.mxu0 %v844
    %987 = vmatpush1.bf16.msra.mxu0 %v843
    %988 = vmatprep.subr.bf16.mxu0 %v842
    %989 = vmatpush1.bf16.msra.mxu0 %v841
    %990 = vmatprep.subr.bf16.mxu0 %v840
    %991 = vmatpush1.bf16.msra.mxu0 %v839
    %992 = vmatprep.subr.bf16.mxu0 %v870
    %993 = vmatpush2.bf16.msra.mxu0 %v869
    %994 = vmatprep.subr.bf16.mxu0 %v868
    %995 = vmatpush2.bf16.msra.mxu0 %v867
    %996 = vmatprep.subr.bf16.mxu0 %v866
    %997 = vmatpush2.bf16.msra.mxu0 %v865
    %998 = vmatprep.subr.bf16.mxu0 %v864
    %999 = vmatpush2.bf16.msra.mxu0 %v863
    %1000 = vmatprep.subr.bf16.mxu0 %v862
    %1001 = vmatpush2.bf16.msra.mxu0 %v861
    %1002 = vmatprep.subr.bf16.mxu0 %v860
    %1003 = vmatpush2.bf16.msra.mxu0 %v859
    %1004 = vmatprep.subr.bf16.mxu0 %v858
    %1005 = vmatpush2.bf16.msra.mxu0 %v857
    %1006 = vmatprep.subr.bf16.mxu0 %v856
    %1007 = vmatpush2.bf16.msra.mxu0 %v855
    %1008 = vmatprep.mubr.bf16.mxu0 %v538
    %1009 = vmatmul.mubr.bf16.gmra.mxu0 %v537
    %v1010 = vpop.f32.mrf.mxu0
    %v1011 = vadd.f32 %v970, %v1010
    %v1012 = vpop.f32.mrf.mxu0
    %v1013 = vadd.f32 %v972, %v1012
    %v1014 = vpop.f32.mrf.mxu0
    %v1015 = vpop.f32.mrf.mxu0
    %1016 = vdwg.mxu0
    %v1017 = vmax.f32 %v1011, 0.0
    %v1018 = vmax.f32 %v1013, 0.0
    %v1019 = vpack.c.bf16 %v1017, %v1017
    %v1020 = vpack.c.bf16 %v1018, %v1018
    %v1021 = vld [vmem:[#allocation7] sm:$0xff]
    %v1022 = vld [vmem:[#allocation7 + $0x8] sm:$0xff]
    %v1023 = vld [vmem:[#allocation7 + $0x10] sm:$0xff]
    %v1024 = vld [vmem:[#allocation7 + $0x18] sm:$0xff]
    %v1025 = vld [vmem:[#allocation7 + $0x20] sm:$0xff]
    %v1026 = vld [vmem:[#allocation7 + $0x28] sm:$0xff]
    %v1027 = vld [vmem:[#allocation7 + $0x30] sm:$0xff]
    %v1028 = vld [vmem:[#allocation7 + $0x38] sm:$0xff]
    %v1029 = vld [vmem:[#allocation7 + $0x40] sm:$0xff]
    %v1030 = vld [vmem:[#allocation7 + $0x48] sm:$0xff]
    %v1031 = vld [vmem:[#allocation7 + $0x50] sm:$0xff]
    %v1032 = vld [vmem:[#allocation7 + $0x58] sm:$0xff]
    %v1033 = vld [vmem:[#allocation7 + $0x60] sm:$0xff]
    %v1034 = vld [vmem:[#allocation7 + $0x68] sm:$0xff]
    %v1035 = vld [vmem:[#allocation7 + $0x70] sm:$0xff]
    %v1036 = vld [vmem:[#allocation7 + $0x78] sm:$0xff]
    %v1037 = vld [vmem:[#allocation7 + $0x80] sm:$0xff]
    %v1038 = vld [vmem:[#allocation7 + $0x88] sm:$0xff]
    %v1039 = vld [vmem:[#allocation7 + $0x90] sm:$0xff]
    %v1040 = vld [vmem:[#allocation7 + $0x98] sm:$0xff]
    %v1041 = vld [vmem:[#allocation7 + $0xa0] sm:$0xff]
    %v1042 = vld [vmem:[#allocation7 + $0xa8] sm:$0xff]
    %v1043 = vld [vmem:[#allocation7 + $0xb0] sm:$0xff]
    %v1044 = vld [vmem:[#allocation7 + $0xb8] sm:$0xff]
    %v1045 = vld [vmem:[#allocation7 + $0xc0] sm:$0xff]
    %v1046 = vld [vmem:[#allocation7 + $0xc8] sm:$0xff]
    %v1047 = vld [vmem:[#allocation7 + $0xd0] sm:$0xff]
    %v1048 = vld [vmem:[#allocation7 + $0xd8] sm:$0xff]
    %v1049 = vld [vmem:[#allocation7 + $0xe0] sm:$0xff]
    %v1050 = vld [vmem:[#allocation7 + $0xe8] sm:$0xff]
    %v1051 = vld [vmem:[#allocation7 + $0xf0] sm:$0xff]
    %v1052 = vld [vmem:[#allocation7 + $0xf8] sm:$0xff]
    %v1053 = vld [vmem:[%s6] sm:$0x3]
    %v1055 = vlaneseq
    %v1056 = vshrl.u32 %v1055, 7
    %v1057 = vsub.s32 0, %v1056
    %v1058 = vrot.slane %v1053, %v1057
    %v1059 = vlaneseq
    %v1060 = vshrl.u32 %v1059, 7
    %v1061 = vsub.s32 1, %v1060
    %v1062 = vrot.slane %v1053, %v1061
    %v1097 = vunpack.c.l.b16 %v1021
    %v1098 = vunpack.c.h.b16 %v1021
    %v1099 = vunpack.c.l.b16 %v1022
    %v1100 = vunpack.c.h.b16 %v1022
    %v1101 = vunpack.c.l.b16 %v1023
    %v1102 = vunpack.c.h.b16 %v1023
    %v1103 = vunpack.c.l.b16 %v1024
    %v1104 = vunpack.c.h.b16 %v1024
    %v1105 = vunpack.c.l.b16 %v1025
    %v1106 = vunpack.c.h.b16 %v1025
    %v1107 = vunpack.c.l.b16 %v1026
    %v1108 = vunpack.c.h.b16 %v1026
    %v1109 = vunpack.c.l.b16 %v1027
    %v1110 = vunpack.c.h.b16 %v1027
    %v1111 = vunpack.c.l.b16 %v1028
    %v1112 = vunpack.c.h.b16 %v1028
    %v1113 = vunpack.c.l.b16 %v1029
    %v1114 = vunpack.c.h.b16 %v1029
    %v1115 = vunpack.c.l.b16 %v1030
    %v1116 = vunpack.c.h.b16 %v1030
    %v1117 = vunpack.c.l.b16 %v1031
    %v1118 = vunpack.c.h.b16 %v1031
    %v1119 = vunpack.c.l.b16 %v1032
    %v1120 = vunpack.c.h.b16 %v1032
    %v1121 = vunpack.c.l.b16 %v1033
    %v1122 = vunpack.c.h.b16 %v1033
    %v1123 = vunpack.c.l.b16 %v1034
    %v1124 = vunpack.c.h.b16 %v1034
    %v1125 = vunpack.c.l.b16 %v1035
    %v1126 = vunpack.c.h.b16 %v1035
    %v1127 = vunpack.c.l.b16 %v1036
    %v1128 = vunpack.c.h.b16 %v1036
    %v1129 = vunpack.c.l.b16 %v1037
    %v1130 = vunpack.c.h.b16 %v1037
    %v1131 = vunpack.c.l.b16 %v1038
    %v1132 = vunpack.c.h.b16 %v1038
    %v1133 = vunpack.c.l.b16 %v1039
    %v1134 = vunpack.c.h.b16 %v1039
    %v1135 = vunpack.c.l.b16 %v1040
    %v1136 = vunpack.c.h.b16 %v1040
    %v1137 = vunpack.c.l.b16 %v1041
    %v1138 = vunpack.c.h.b16 %v1041
    %v1139 = vunpack.c.l.b16 %v1042
    %v1140 = vunpack.c.h.b16 %v1042
    %v1141 = vunpack.c.l.b16 %v1043
    %v1142 = vunpack.c.h.b16 %v1043
    %v1143 = vunpack.c.l.b16 %v1044
    %v1144 = vunpack.c.h.b16 %v1044
    %v1145 = vunpack.c.l.b16 %v1045
    %v1146 = vunpack.c.h.b16 %v1045
    %v1147 = vunpack.c.l.b16 %v1046
    %v1148 = vunpack.c.h.b16 %v1046
    %v1149 = vunpack.c.l.b16 %v1047
    %v1150 = vunpack.c.h.b16 %v1047
    %v1151 = vunpack.c.l.b16 %v1048
    %v1152 = vunpack.c.h.b16 %v1048
    %v1153 = vunpack.c.l.b16 %v1049
    %v1154 = vunpack.c.h.b16 %v1049
    %v1155 = vunpack.c.l.b16 %v1050
    %v1156 = vunpack.c.h.b16 %v1050
    %v1157 = vunpack.c.l.b16 %v1051
    %v1158 = vunpack.c.h.b16 %v1051
    %v1159 = vunpack.c.l.b16 %v1052
    %v1160 = vunpack.c.h.b16 %v1052
    %v1161 = vpack.c.b16 %v1099, %v1097
    %v1162 = vpack.c.b16 %v1100, %v1098
    %v1163 = vpack.c.b16 %v1103, %v1101
    %v1164 = vpack.c.b16 %v1104, %v1102
    %v1165 = vpack.c.b16 %v1107, %v1105
    %v1166 = vpack.c.b16 %v1108, %v1106
    %v1167 = vpack.c.b16 %v1111, %v1109
    %v1168 = vpack.c.b16 %v1112, %v1110
    %v1169 = vpack.c.b16 %v1115, %v1113
    %v1170 = vpack.c.b16 %v1116, %v1114
    %v1171 = vpack.c.b16 %v1119, %v1117
    %v1172 = vpack.c.b16 %v1120, %v1118
    %v1173 = vpack.c.b16 %v1123, %v1121
    %v1174 = vpack.c.b16 %v1124, %v1122
    %v1175 = vpack.c.b16 %v1127, %v1125
    %v1176 = vpack.c.b16 %v1128, %v1126
    %v1177 = vpack.c.b16 %v1131, %v1129
    %v1178 = vpack.c.b16 %v1132, %v1130
    %v1179 = vpack.c.b16 %v1135, %v1133
    %v1180 = vpack.c.b16 %v1136, %v1134
    %v1181 = vpack.c.b16 %v1139, %v1137
    %v1182 = vpack.c.b16 %v1140, %v1138
    %v1183 = vpack.c.b16 %v1143, %v1141
    %v1184 = vpack.c.b16 %v1144, %v1142
    %v1185 = vpack.c.b16 %v1147, %v1145
    %v1186 = vpack.c.b16 %v1148, %v1146
    %v1187 = vpack.c.b16 %v1151, %v1149
    %v1188 = vpack.c.b16 %v1152, %v1150
    %v1189 = vpack.c.b16 %v1155, %v1153
    %v1190 = vpack.c.b16 %v1156, %v1154
    %v1191 = vpack.c.b16 %v1159, %v1157
    %v1192 = vpack.c.b16 %v1160, %v1158
    %1225 = vmatprep.subr.bf16.mxu0 %v1176
    %1226 = vmatpush1.bf16.msra.mxu0 %v1175
    %1227 = vmatprep.subr.bf16.mxu0 %v1174
    %1228 = vmatpush1.bf16.msra.mxu0 %v1173
    %1229 = vmatprep.subr.bf16.mxu0 %v1172
    %1230 = vmatpush1.bf16.msra.mxu0 %v1171
    %1231 = vmatprep.subr.bf16.mxu0 %v1170
    %1232 = vmatpush1.bf16.msra.mxu0 %v1169
    %1233 = vmatprep.subr.bf16.mxu0 %v1168
    %1234 = vmatpush1.bf16.msra.mxu0 %v1167
    %1235 = vmatprep.subr.bf16.mxu0 %v1166
    %1236 = vmatpush1.bf16.msra.mxu0 %v1165
    %1237 = vmatprep.subr.bf16.mxu0 %v1164
    %1238 = vmatpush1.bf16.msra.mxu0 %v1163
    %1239 = vmatprep.subr.bf16.mxu0 %v1162
    %1240 = vmatpush1.bf16.msra.mxu0 %v1161
    %1241 = vmatprep.subr.bf16.mxu0 %v1192
    %1242 = vmatpush2.bf16.msra.mxu0 %v1191
    %1243 = vmatprep.subr.bf16.mxu0 %v1190
    %1244 = vmatpush2.bf16.msra.mxu0 %v1189
    %1245 = vmatprep.subr.bf16.mxu0 %v1188
    %1246 = vmatpush2.bf16.msra.mxu0 %v1187
    %1247 = vmatprep.subr.bf16.mxu0 %v1186
    %1248 = vmatpush2.bf16.msra.mxu0 %v1185
    %1249 = vmatprep.subr.bf16.mxu0 %v1184
    %1250 = vmatpush2.bf16.msra.mxu0 %v1183
    %1251 = vmatprep.subr.bf16.mxu0 %v1182
    %1252 = vmatpush2.bf16.msra.mxu0 %v1181
    %1253 = vmatprep.subr.bf16.mxu0 %v1180
    %1254 = vmatpush2.bf16.msra.mxu0 %v1179
    %1255 = vmatprep.subr.bf16.mxu0 %v1178
    %1256 = vmatpush2.bf16.msra.mxu0 %v1177
    %1257 = vmatprep.mubr.bf16.mxu0 %v1020
    %1258 = vmatmul.mubr.bf16.gmra.mxu0 %v1019
    %v1259 = vpop.f32.mrf.mxu0
    %v1260 = vadd.f32 %v1058, %v1259
    %v1261 = vpop.f32.mrf.mxu0
    %v1262 = vadd.f32 %v1062, %v1261
    %v1263 = vpop.f32.mrf.mxu0
    %v1264 = vpop.f32.mrf.mxu0
    %1265 = vdwg.mxu0
    %v1266 = vmax.f32 %v1260, 0.0
    %v1267 = vmax.f32 %v1262, 0.0
    %v1268 = vpack.c.bf16 %v1266, %v1266
    %v1269 = vpack.c.bf16 %v1267, %v1267
    %v1270 = vld [vmem:[%s7] sm:$0xf]
    %v1271 = vld [vmem:[%s7 + $0x4] sm:$0xf]
    %v1272 = vld [vmem:[%s7 + $0x8] sm:$0xf]
    %v1273 = vld [vmem:[%s7 + $0xc] sm:$0xf]
    %v1274 = vld [vmem:[%s7 + $0x10] sm:$0xf]
    %v1275 = vld [vmem:[%s7 + $0x14] sm:$0xf]
    %v1276 = vld [vmem:[%s7 + $0x18] sm:$0xf]
    %v1277 = vld [vmem:[%s7 + $0x1c] sm:$0xf]
    %v1278 = vld [vmem:[%s7 + $0x20] sm:$0xf]
    %v1279 = vld [vmem:[%s7 + $0x24] sm:$0xf]
    %v1280 = vld [vmem:[%s7 + $0x28] sm:$0xf]
    %v1281 = vld [vmem:[%s7 + $0x2c] sm:$0xf]
    %v1282 = vld [vmem:[%s7 + $0x30] sm:$0xf]
    %v1283 = vld [vmem:[%s7 + $0x34] sm:$0xf]
    %v1284 = vld [vmem:[%s7 + $0x38] sm:$0xf]
    %v1285 = vld [vmem:[%s7 + $0x3c] sm:$0xf]
    %v1286 = vld [vmem:[%s7 + $0x40] sm:$0xf]
    %v1287 = vld [vmem:[%s7 + $0x44] sm:$0xf]
    %v1288 = vld [vmem:[%s7 + $0x48] sm:$0xf]
    %v1289 = vld [vmem:[%s7 + $0x4c] sm:$0xf]
    %v1290 = vld [vmem:[%s7 + $0x50] sm:$0xf]
    %v1291 = vld [vmem:[%s7 + $0x54] sm:$0xf]
    %v1292 = vld [vmem:[%s7 + $0x58] sm:$0xf]
    %v1293 = vld [vmem:[%s7 + $0x5c] sm:$0xf]
    %v1294 = vld [vmem:[%s7 + $0x60] sm:$0xf]
    %v1295 = vld [vmem:[%s7 + $0x64] sm:$0xf]
    %v1296 = vld [vmem:[%s7 + $0x68] sm:$0xf]
    %v1297 = vld [vmem:[%s7 + $0x6c] sm:$0xf]
    %v1298 = vld [vmem:[%s7 + $0x70] sm:$0xf]
    %v1299 = vld [vmem:[%s7 + $0x74] sm:$0xf]
    %v1300 = vld [vmem:[%s7 + $0x78] sm:$0xf]
    %v1301 = vld [vmem:[%s7 + $0x7c] sm:$0xf]
    %v1302 = vld [vmem:[%s8] sm:$0x1]
    %v1304 = vlaneseq
    %v1305 = vshrl.u32 %v1304, 7
    %v1306 = vsub.s32 0, %v1305
    %v1307 = vrot.slane %v1302, %v1306
    %v1341 = vunpack.c.l.b16 %v1270
    %v1342 = vunpack.c.l.b16 %v1271
    %v1343 = vunpack.c.l.b16 %v1272
    %v1344 = vunpack.c.l.b16 %v1273
    %v1345 = vunpack.c.l.b16 %v1274
    %v1346 = vunpack.c.l.b16 %v1275
    %v1347 = vunpack.c.l.b16 %v1276
    %v1348 = vunpack.c.l.b16 %v1277
    %v1349 = vunpack.c.l.b16 %v1278
    %v1350 = vunpack.c.l.b16 %v1279
    %v1351 = vunpack.c.l.b16 %v1280
    %v1352 = vunpack.c.l.b16 %v1281
    %v1353 = vunpack.c.l.b16 %v1282
    %v1354 = vunpack.c.l.b16 %v1283
    %v1355 = vunpack.c.l.b16 %v1284
    %v1356 = vunpack.c.l.b16 %v1285
    %v1357 = vunpack.c.l.b16 %v1286
    %v1358 = vunpack.c.l.b16 %v1287
    %v1359 = vunpack.c.l.b16 %v1288
    %v1360 = vunpack.c.l.b16 %v1289
    %v1361 = vunpack.c.l.b16 %v1290
    %v1362 = vunpack.c.l.b16 %v1291
    %v1363 = vunpack.c.l.b16 %v1292
    %v1364 = vunpack.c.l.b16 %v1293
    %v1365 = vunpack.c.l.b16 %v1294
    %v1366 = vunpack.c.l.b16 %v1295
    %v1367 = vunpack.c.l.b16 %v1296
    %v1368 = vunpack.c.l.b16 %v1297
    %v1369 = vunpack.c.l.b16 %v1298
    %v1370 = vunpack.c.l.b16 %v1299
    %v1371 = vunpack.c.l.b16 %v1300
    %v1372 = vunpack.c.l.b16 %v1301
    %v1373 = vpack.c.b16 %v1342, %v1341
    %v1374 = vpack.c.b16 %v1344, %v1343
    %v1375 = vpack.c.b16 %v1346, %v1345
    %v1376 = vpack.c.b16 %v1348, %v1347
    %v1377 = vpack.c.b16 %v1350, %v1349
    %v1378 = vpack.c.b16 %v1352, %v1351
    %v1379 = vpack.c.b16 %v1354, %v1353
    %v1380 = vpack.c.b16 %v1356, %v1355
    %v1381 = vpack.c.b16 %v1358, %v1357
    %v1382 = vpack.c.b16 %v1360, %v1359
    %v1383 = vpack.c.b16 %v1362, %v1361
    %v1384 = vpack.c.b16 %v1364, %v1363
    %v1385 = vpack.c.b16 %v1366, %v1365
    %v1386 = vpack.c.b16 %v1368, %v1367
    %v1387 = vpack.c.b16 %v1370, %v1369
    %v1388 = vpack.c.b16 %v1372, %v1371
    %1405 = vmatprep.subr.bf16.mxu0 0
    %1406 = vmatpush1.bf16.msra.mxu0 %v1380
    %1407 = vmatprep.subr.bf16.mxu0 0
    %1408 = vmatpush1.bf16.msra.mxu0 %v1379
    %1409 = vmatprep.subr.bf16.mxu0 0
    %1410 = vmatpush1.bf16.msra.mxu0 %v1378
    %1411 = vmatprep.subr.bf16.mxu0 0
    %1412 = vmatpush1.bf16.msra.mxu0 %v1377
    %1413 = vmatprep.subr.bf16.mxu0 0
    %1414 = vmatpush1.bf16.msra.mxu0 %v1376
    %1415 = vmatprep.subr.bf16.mxu0 0
    %1416 = vmatpush1.bf16.msra.mxu0 %v1375
    %1417 = vmatprep.subr.bf16.mxu0 0
    %1418 = vmatpush1.bf16.msra.mxu0 %v1374
    %1419 = vmatprep.subr.bf16.mxu0 0
    %1420 = vmatpush1.bf16.msra.mxu0 %v1373
    %1421 = vmatprep.subr.bf16.mxu0 0
    %1422 = vmatpush2.bf16.msra.mxu0 %v1388
    %1423 = vmatprep.subr.bf16.mxu0 0
    %1424 = vmatpush2.bf16.msra.mxu0 %v1387
    %1425 = vmatprep.subr.bf16.mxu0 0
    %1426 = vmatpush2.bf16.msra.mxu0 %v1386
    %1427 = vmatprep.subr.bf16.mxu0 0
    %1428 = vmatpush2.bf16.msra.mxu0 %v1385
    %1429 = vmatprep.subr.bf16.mxu0 0
    %1430 = vmatpush2.bf16.msra.mxu0 %v1384
    %1431 = vmatprep.subr.bf16.mxu0 0
    %1432 = vmatpush2.bf16.msra.mxu0 %v1383
    %1433 = vmatprep.subr.bf16.mxu0 0
    %1434 = vmatpush2.bf16.msra.mxu0 %v1382
    %1435 = vmatprep.subr.bf16.mxu0 0
    %1436 = vmatpush2.bf16.msra.mxu0 %v1381
    %1437 = vmatprep.mubr.bf16.mxu0 %v1269
    %1438 = vmatmul.mubr.bf16.gmra.mxu0 %v1268
    %v1439 = vpop.f32.mrf.mxu0
    %v1440 = vadd.f32 %v1307, %v1439
    %v1441 = vpop.f32.mrf.mxu0
    %v1442 = vpop.f32.mrf.mxu0
    %v1443 = vpop.f32.mrf.mxu0
    %1444 = vdwg.mxu0
    %v1445 = vmax.f32 %v1440, 0.0
    %v1446 = vpack.c.bf16 %v1445, %v1445
    %v1447 = vld [vmem:[%s9] sm:$0xf]
    %v1448 = vld [vmem:[%s9 + $0x4] sm:$0xf]
    %v1449 = vld [vmem:[%s9 + $0x8] sm:$0xf]
    %v1450 = vld [vmem:[%s9 + $0xc] sm:$0xf]
    %v1451 = vld [vmem:[%s9 + $0x10] sm:$0xf]
    %v1452 = vld [vmem:[%s9 + $0x14] sm:$0xf]
    %v1453 = vld [vmem:[%s9 + $0x18] sm:$0xf]
    %v1454 = vld [vmem:[%s9 + $0x1c] sm:$0xf]
    %v1455 = vld [vmem:[%s9 + $0x20] sm:$0xf]
    %v1456 = vld [vmem:[%s9 + $0x24] sm:$0xf]
    %v1457 = vld [vmem:[%s9 + $0x28] sm:$0xf]
    %v1458 = vld [vmem:[%s9 + $0x2c] sm:$0xf]
    %v1459 = vld [vmem:[%s9 + $0x30] sm:$0xf]
    %v1460 = vld [vmem:[%s9 + $0x34] sm:$0xf]
    %v1461 = vld [vmem:[%s9 + $0x38] sm:$0xf]
    %v1462 = vld [vmem:[%s9 + $0x3c] sm:$0xf]
    %v1463 = vld [vmem:[%s10] sm:$0x1]
    %v1465 = vlaneseq
    %v1466 = vshrl.u32 %v1465, 7
    %v1467 = vsub.s32 0, %v1466
    %v1468 = vrot.slane %v1463, %v1467
    %v1486 = vunpack.c.l.b16 %v1447
    %v1487 = vunpack.c.l.b16 %v1448
    %v1488 = vunpack.c.l.b16 %v1449
    %v1489 = vunpack.c.l.b16 %v1450
    %v1490 = vunpack.c.l.b16 %v1451
    %v1491 = vunpack.c.l.b16 %v1452
    %v1492 = vunpack.c.l.b16 %v1453
    %v1493 = vunpack.c.l.b16 %v1454
    %v1494 = vunpack.c.l.b16 %v1455
    %v1495 = vunpack.c.l.b16 %v1456
    %v1496 = vunpack.c.l.b16 %v1457
    %v1497 = vunpack.c.l.b16 %v1458
    %v1498 = vunpack.c.l.b16 %v1459
    %v1499 = vunpack.c.l.b16 %v1460
    %v1500 = vunpack.c.l.b16 %v1461
    %v1501 = vunpack.c.l.b16 %v1462
    %v1502 = vpack.c.b16 %v1487, %v1486
    %v1503 = vpack.c.b16 %v1489, %v1488
    %v1504 = vpack.c.b16 %v1491, %v1490
    %v1505 = vpack.c.b16 %v1493, %v1492
    %v1506 = vpack.c.b16 %v1495, %v1494
    %v1507 = vpack.c.b16 %v1497, %v1496
    %v1508 = vpack.c.b16 %v1499, %v1498
    %v1509 = vpack.c.b16 %v1501, %v1500
    %1518 = vmatprep.subr.bf16.mxu0 0
    %1519 = vmatpush1.bf16.msra.mxu0 %v1509
    %1520 = vmatprep.subr.bf16.mxu0 0
    %1521 = vmatpush1.bf16.msra.mxu0 %v1508
    %1522 = vmatprep.subr.bf16.mxu0 0
    %1523 = vmatpush1.bf16.msra.mxu0 %v1507
    %1524 = vmatprep.subr.bf16.mxu0 0
    %1525 = vmatpush1.bf16.msra.mxu0 %v1506
    %1526 = vmatprep.subr.bf16.mxu0 0
    %1527 = vmatpush1.bf16.msra.mxu0 %v1505
    %1528 = vmatprep.subr.bf16.mxu0 0
    %1529 = vmatpush1.bf16.msra.mxu0 %v1504
    %1530 = vmatprep.subr.bf16.mxu0 0
    %1531 = vmatpush1.bf16.msra.mxu0 %v1503
    %1532 = vmatprep.subr.bf16.mxu0 0
    %1533 = vmatpush1.bf16.msra.mxu0 %v1502
    %1534 = vmatprep.subr.bf16.mxu0 0
    %1535 = vmatpush2.bf16.msra.mxu0 0
    %1536 = vmatprep.subr.bf16.mxu0 0
    %1537 = vmatpush2.bf16.msra.mxu0 0
    %1538 = vmatprep.subr.bf16.mxu0 0
    %1539 = vmatpush2.bf16.msra.mxu0 0
    %1540 = vmatprep.subr.bf16.mxu0 0
    %1541 = vmatpush2.bf16.msra.mxu0 0
    %1542 = vmatprep.subr.bf16.mxu0 0
    %1543 = vmatpush2.bf16.msra.mxu0 0
    %1544 = vmatprep.subr.bf16.mxu0 0
    %1545 = vmatpush2.bf16.msra.mxu0 0
    %1546 = vmatprep.subr.bf16.mxu0 0
    %1547 = vmatpush2.bf16.msra.mxu0 0
    %1548 = vmatprep.subr.bf16.mxu0 0
    %1549 = vmatpush2.bf16.msra.mxu0 0
    %1550 = vmatprep.mubr.bf16.mxu0 0
    %1551 = vmatmul.mubr.bf16.gmra.mxu0 %v1446
    %v1552 = vpop.f32.mrf.mxu0
    %v1553 = vadd.f32 %v1468, %v1552
    %v1554 = vpop.f32.mrf.mxu0
    %v1555 = vpop.f32.mrf.mxu0
    %v1556 = vpop.f32.mrf.mxu0
    %1557 = vdwg.mxu0
    %v1558 = vmax.f32 %v1553, 0.0
    %v1559 = vpack.c.bf16 %v1558, %v1558
    %v1560 = vld [vmem:[%s11] sm:$0xf]
    %v1561 = vld [vmem:[%s11 + $0x4] sm:$0xf]
    %v1562 = vld [vmem:[%s11 + $0x8] sm:$0xf]
    %v1563 = vld [vmem:[%s11 + $0xc] sm:$0xf]
    %v1564 = vld [vmem:[%s11 + $0x10] sm:$0xf]
    %v1565 = vld [vmem:[%s11 + $0x14] sm:$0xf]
    %v1566 = vld [vmem:[%s11 + $0x18] sm:$0xf]
    %v1567 = vld [vmem:[%s11 + $0x1c] sm:$0xf]
    %v1568 = vld [vmem:[%s12] sm:$0x1]
    %v1570 = vlaneseq
    %v1571 = vshrl.u32 %v1570, 7
    %v1572 = vsub.s32 0, %v1571
    %v1573 = vrot.slane %v1568, %v1572
    %v1583 = vunpack.c.l.b16 %v1560
    %v1584 = vunpack.c.l.b16 %v1561
    %v1585 = vunpack.c.l.b16 %v1562
    %v1586 = vunpack.c.l.b16 %v1563
    %v1587 = vunpack.c.l.b16 %v1564
    %v1588 = vunpack.c.l.b16 %v1565
    %v1589 = vunpack.c.l.b16 %v1566
    %v1590 = vunpack.c.l.b16 %v1567
    %v1591 = vpack.c.b16 %v1584, %v1583
    %v1592 = vpack.c.b16 %v1586, %v1585
    %v1593 = vpack.c.b16 %v1588, %v1587
    %v1594 = vpack.c.b16 %v1590, %v1589
    %vm1599 = vcmask 523264
    %v1601 = vsel %vm1599, %v1559, 0
    %1603 = vmatprep.subr.bf16.mxu0 0
    %1604 = vmatpush1.bf16.msra.mxu0 0
    %1605 = vmatprep.subr.bf16.mxu0 0
    %1606 = vmatpush1.bf16.msra.mxu0 0
    %1607 = vmatprep.subr.bf16.mxu0 0
    %1608 = vmatpush1.bf16.msra.mxu0 0
    %1609 = vmatprep.subr.bf16.mxu0 0
    %1610 = vmatpush1.bf16.msra.mxu0 0
    %1611 = vmatprep.subr.bf16.mxu0 0
    %1612 = vmatpush1.bf16.msra.mxu0 %v1594
    %1613 = vmatprep.subr.bf16.mxu0 0
    %1614 = vmatpush1.bf16.msra.mxu0 %v1593
    %1615 = vmatprep.subr.bf16.mxu0 0
    %1616 = vmatpush1.bf16.msra.mxu0 %v1592
    %1617 = vmatprep.subr.bf16.mxu0 0
    %1618 = vmatpush1.bf16.msra.mxu0 %v1591
    %1619 = vmatprep.subr.bf16.mxu0 0
    %1620 = vmatpush2.bf16.msra.mxu0 0
    %1621 = vmatprep.subr.bf16.mxu0 0
    %1622 = vmatpush2.bf16.msra.mxu0 0
    %1623 = vmatprep.subr.bf16.mxu0 0
    %1624 = vmatpush2.bf16.msra.mxu0 0
    %1625 = vmatprep.subr.bf16.mxu0 0
    %1626 = vmatpush2.bf16.msra.mxu0 0
    %1627 = vmatprep.subr.bf16.mxu0 0
    %1628 = vmatpush2.bf16.msra.mxu0 0
    %1629 = vmatprep.subr.bf16.mxu0 0
    %1630 = vmatpush2.bf16.msra.mxu0 0
    %1631 = vmatprep.subr.bf16.mxu0 0
    %1632 = vmatpush2.bf16.msra.mxu0 0
    %1633 = vmatprep.subr.bf16.mxu0 0
    %1634 = vmatpush2.bf16.msra.mxu0 0
    %1635 = vmatprep.mubr.bf16.mxu0 0
    %1636 = vmatmul.mubr.bf16.gmra.mxu0 %v1601
    %v1637 = vpop.f32.mrf.mxu0
    %v1638 = vadd.f32 %v1573, %v1637
    %v1639 = vpop.f32.mrf.mxu0
    %v1640 = vpop.f32.mrf.mxu0
    %v1641 = vpop.f32.mrf.mxu0
    %1642 = vdwg.mxu0
    %v1643 = vlaneseq
    %v1644 = vand.u32 %v1643, 127
    %v1645 = vxor.u32 %v1638, 2147483648
    %v1646 = vmul.f32 %v1645, 1.442695
    %v1647 = vpow.pop %v1646
    %v1648 = vadd.f32 %v1647, 1.0
    %v1649 = vrcp.pop %v1648
    %v1650 = vmul.f32 1.0, %v1649
    %v1651 = vmax.f32 %v1638, -2.0
    %v1652 = vmin.f32 %v1651, 2.0
    %v1653 = vmul.f32 %v1652, 1.442695
    %v1654 = vpow.pop %v1653
    %vm1655 = vcmp.eq.s32.totalorder %v1644, 0
    %v1656 = vsel %vm1655, %v1650, %v1654
    %vm1657 = vcmask 15360
    %1658 = vst.msk [vmem:[%s13] sm:$0xff] %vm1657, %v1656
    // Predicated region
    $region70: #{pdmc_forward.1} parent=1 // pred_check
      _
    $region71: #{pdmc_forward.1} parent=1 // pred_check_branch
      %1660 = sbr.rel (0) target = $region73
    $region72: #{pdmc_forward.1} parent=1 // pred_region
      _
    $region73: #{pdmc_forward.1} parent=1 // pred_fallthru
      _
    // Predicated region
    $region74: #{pdmc_forward.1} parent=1 // pred_check
      _
    $region75: #{pdmc_forward.1} parent=1 // pred_check_branch
      %1662 = sbr.rel (0) target = $region77
    $region76: #{pdmc_forward.1} parent=1 // pred_region
      _
    $region77: #{pdmc_forward.1} parent=1 // pred_fallthru
      _
    %1663 = vsyncpa [#allocation3], 1
    %1664 = vsyncpa [#allocation5], 1
    %1665 = vsyncpa [#allocation8], 1

</llo_original>
